<compile_context>
chip_gen: v6e
topology: v6e:2x2x1
jax: 0.10.0
libtpu: 0.0.40
codegen_flags: <defaults>
</compile_context>

<pallas_src>
import functools

import numpy as np
import jax
import jax.numpy as jnp
from jax import lax
from jax.experimental import pallas as pl
from jax.experimental.pallas import tpu as pltpu

OUTCHANNEL_RATIO = 4
KSIZE = 7             # conv2 kernel size for the stride=1 path
KHALF = KSIZE // 2    # padding = 3
N_TAPS = KSIZE * KSIZE          # 49
N_TAPS_PAD = N_TAPS + 1         # 50: pad with a dummy (zero) tap for alignment


# ------------------------------ Pallas kernel -------------------------------

def _bottleneck_kernel(x_ref, w1_ref, w2_ref, w3_ref, maskb_ref,
                       c1_ref, c2_ref, c3_ref,
                       o_ref, taps_ref, *, bb, cin, cout, planes, W, n):
    for bi in range(bb):                           # static unroll over batch block
        x = x_ref[bi]                              # (cin, n) f32

        # --- conv1 (1x1) with bn1/bn2 folded into the weight, + relu ---
        a2 = jnp.dot(w1_ref[...], x, preferred_element_type=jnp.float32)
        a2 = jnp.maximum(a2 + c1_ref[...], 0.0)    # (planes, n) f32

        # --- conv2 (7x7, pad 3): 49 lane-rolls of the VMEM-resident activation,
        # masked by the precomputed zero-padding mask.  Taps are written in
        # pairs (2*planes = 16 sublane rows for planes=8) so every bf16 store
        # hits an aligned (16,128) tile; tap 49 is a dummy, zeroed by its mask.
        for tp in range(0, N_TAPS_PAD, 2):
            rows = slice(tp * planes, (tp + 2) * planes)
            parts = []
            for t in (tp, tp + 1):
                if t < N_TAPS:
                    ky, kx = divmod(t, KSIZE)
                    k = (ky - KHALF) * W + (kx - KHALF)
                    parts.append(a2 if k == 0
                                 else pltpu.roll(a2, shift=(-k) % n, axis=1))
                else:
                    parts.append(a2)               # dummy tap, masked to zero
            pair = jnp.concatenate(parts, axis=0) * maskb_ref[rows, :]
            taps_ref[rows, :] = pair.astype(jnp.bfloat16)

        # --- conv2 matmul (bf16 x bf16 -> f32, K = 50*planes) + bn3 bias + relu
        a3 = jnp.dot(w2_ref[...], taps_ref[...],
                     preferred_element_type=jnp.float32)
        a3 = jnp.maximum(a3 + c2_ref[...], 0.0)    # (planes, n) f32

        # --- conv3 (1x1) with bn4 folded ---
        out = jnp.dot(w3_ref[...], a3, preferred_element_type=jnp.float32)
        out = out + c3_ref[...]                    # (cout, n) f32

        # --- shortcut: raw x, zero-padded along channels (torch.cat path) ---
        # Two sliced writes; no zero block / concat materialized.
        if cout == cin:
            o_ref[bi] = (out + x).astype(o_ref.dtype)
        else:
            o_ref[bi, :cin, :] = (out[:cin, :] + x).astype(o_ref.dtype)
            o_ref[bi, cin:, :] = out[cin:, :].astype(o_ref.dtype)


# ------------------------------- wrapper (JAX) -------------------------------

def _conv2_boundary_mask(H, W, planes):
    """(50*planes, H*W) f32 zero-padding mask per tap, pre-broadcast over the
    `planes` rows of each tap.  The 50th (dummy) tap is all zeros."""
    n = H * W
    ii = np.arange(H).reshape(H, 1)
    jj = np.arange(W).reshape(1, W)
    rows = []
    for ky in range(KSIZE):
        for kx in range(KSIZE):
            oy, ox = ky - KHALF, kx - KHALF
            ok = ((ii + oy >= 0) & (ii + oy < H) &
                  (jj + ox >= 0) & (jj + ox < W))
            rows.append(np.broadcast_to(ok, (H, W)).reshape(n))
    rows.append(np.zeros((n,), np.bool_))                    # dummy tap
    m = np.stack(rows, 0).astype(np.float32)                 # (50, n)
    return jnp.asarray(np.repeat(m, planes, axis=0))         # (50*planes, n)


def _pick_batch_block(B):
    """Fewer, fatter grid steps for single-TC chips, but keep >=2 steps (and an
    even count) so the 'parallel' batch axis still fills both v7x TCs."""
    cap = min(max(B // 2, 1), 8)
    for bb in range(cap, 0, -1):
        if B % bb == 0:
            return bb
    return 1


def _vmem_limit_bytes(bb, cin, cout, planes, n):
    f32, bf16 = 4, 2
    taps = N_TAPS_PAD * planes * n * bf16
    io_blocks = 2 * bb * (cin + cout) * n * f32              # double-buffered I/O
    consts = (planes * cin * f32                              # w1f
              + planes * N_TAPS_PAD * planes * bf16           # w2f
              + cout * planes * f32                           # w3f
              + N_TAPS_PAD * planes * n * f32                 # boundary mask
              + (2 * planes + cout) * f32)                    # biases
    need = taps + io_blocks + 2 * consts
    return int(min(100 * 1024 * 1024, max(32 * 1024 * 1024, 2 * need)))


def bottleneck_forward(x, params, *, batch_block=None):
    """x: (B, inplanes, H, W) -> (B, planes*4, H, W).  stride=1, no downsample."""
    B, cin, H, W = x.shape
    n = H * W
    planes = params["w1f"].shape[0]
    cout = params["w3f"].shape[0]
    assert planes % 8 == 0, "planes must be a multiple of 8 (sublane alignment)"
    assert n % 128 == 0, "H*W must be a multiple of 128 (lane-dense layout)"

    bb = _pick_batch_block(B) if batch_block is None else batch_block
    assert B % bb == 0

    x_cf = x.reshape(B, cin, n).astype(jnp.float32)
    maskb = _conv2_boundary_mask(H, W, planes)       # trace-time constant

    kernel = functools.partial(_bottleneck_kernel, bb=bb, cin=cin, cout=cout,
                               planes=planes, W=W, n=n)

    def full(a):                                     # whole (small) array per step
        return pl.BlockSpec(a.shape, lambda g, nd=a.ndim: (0,) * nd)

    out = pl.pallas_call(
        kernel,
        out_shape=jax.ShapeDtypeStruct((B, cout, n), jnp.float32),
        grid=(B // bb,),
        in_specs=[pl.BlockSpec((bb, cin, n), lambda g: (g, 0, 0)),
                  full(params["w1f"]), full(params["w2f"]), full(params["w3f"]),
                  full(maskb),
                  full(params["c1"]), full(params["c2"]), full(params["c3"])],
        out_specs=pl.BlockSpec((bb, cout, n), lambda g: (g, 0, 0)),
        scratch_shapes=[pltpu.VMEM((N_TAPS_PAD * planes, n), jnp.bfloat16)],
        compiler_params=pltpu.CompilerParams(
            dimension_semantics=("parallel",),       # batch across TCs on v7x
            vmem_limit_bytes=_vmem_limit_bytes(bb, cin, cout, planes, n)),
    )(x_cf, params["w1f"], params["w2f"], params["w3f"], maskb,
      params["c1"], params["c2"], params["c3"])
    return out.reshape(B, cout, H, W)


# ---------------------------- parameters / reference -------------------------

def _fold_bn(gamma, beta, mean, var, eps=1e-5):
    scale = gamma / jnp.sqrt(var + eps)
    return scale, beta - mean * scale


def fold_kernel_params(raw):
    """Fold eval-mode BN scales/shifts into the conv weights (done once in XLA)."""
    w1t = raw["w1"][:, :, 0, 0]                                # (planes, cin)
    w3t = raw["w3"][:, :, 0, 0]                                # (cout, planes)
    planes = w1t.shape[0]
    w2f = jnp.transpose(raw["w2"], (0, 2, 3, 1)).reshape(planes, -1)  # (planes, 49*planes)
    s1, b1 = raw["s1"], raw["b1"]
    s2, b2 = raw["s2"], raw["b2"]
    s3, b3 = raw["s3"], raw["b3"]
    s4, b4 = raw["s4"], raw["b4"]
    col = lambda v: v.reshape(-1, 1).astype(jnp.float32)

    w2f = s3[:, None] * w2f                                    # fold bn3 scale
    w2f = jnp.concatenate(                                     # dummy 50th tap
        [w2f, jnp.zeros((planes, planes), w2f.dtype)], axis=1)
    return dict(
        w1f=(s2[:, None] * w1t * s1[None, :]).astype(jnp.float32),  # bn1+bn2 folded
        c1=col(s2 * (w1t @ b1) + b2),
        w2f=w2f.astype(jnp.bfloat16),
        c2=col(b3),
        w3f=(s4[:, None] * w3t).astype(jnp.float32),                 # bn4 folded
        c3=col(b4))


def init_bottleneck(key, inplanes, planes):
    cout = planes * OUTCHANNEL_RATIO
    ks = jax.random.split(key, 7)
    w1 = 0.1 * jax.random.normal(ks[0], (planes, inplanes, 1, 1), jnp.float32)
    w2 = 0.1 * jax.random.normal(ks[1], (planes, planes, KSIZE, KSIZE), jnp.float32)
    w3 = 0.1 * jax.random.normal(ks[2], (cout, planes, 1, 1), jnp.float32)

    def bn(k, c):
        k1, k2, k3, k4 = jax.random.split(k, 4)
        gamma = 1.0 + 0.1 * jax.random.normal(k1, (c,), jnp.float32)
        beta = 0.1 * jax.random.normal(k2, (c,), jnp.float32)
        mean = 0.1 * jax.random.normal(k3, (c,), jnp.float32)
        var = 0.5 + jax.random.uniform(k4, (c,), jnp.float32)
        return _fold_bn(gamma, beta, mean, var)

    s1, b1 = bn(ks[3], inplanes)
    s2, b2 = bn(ks[4], planes)
    s3, b3 = bn(ks[5], planes)
    s4, b4 = bn(ks[6], cout)

    raw = dict(w1=w1, w2=w2, w3=w3, s1=s1, b1=b1, s2=s2, b2=b2,
               s3=s3, b3=b3, s4=s4, b4=b4)
    return raw, fold_kernel_params(raw)


def bottleneck_ref(x, p):
    """Pure-JAX reference mirroring the PyTorch forward (eval-mode BN)."""
    hp = lax.Precision.HIGHEST
    dn = ("NCHW", "OIHW", "NCHW")

    def bn(v, s, b):
        return v * s[None, :, None, None] + b[None, :, None, None]

    out = bn(x, p["s1"], p["b1"])
    out = lax.conv_general_dilated(out, p["w1"], (1, 1), "VALID",
                                   dimension_numbers=dn, precision=hp)
    out = jax.nn.relu(bn(out, p["s2"], p["b2"]))
    out = lax.conv_general_dilated(out, p["w2"], (1, 1),
                                   [(KHALF, KHALF), (KHALF, KHALF)],
                                   dimension_numbers=dn, precision=hp)
    out = jax.nn.relu(bn(out, p["s3"], p["b3"]))
    out = lax.conv_general_dilated(out, p["w3"], (1, 1), "VALID",
                                   dimension_numbers=dn, precision=hp)
    out = bn(out, p["s4"], p["b4"])
    cin, cout = x.shape[1], out.shape[1]
    shortcut = x
    if cout != cin:
        shortcut = jnp.concatenate(
            [x, jnp.zeros((x.shape[0], cout - cin) + x.shape[2:], x.dtype)],
            axis=1)
    return out + shortcut


# ----------------------------------- main ------------------------------------

if __name__ == "__main__":
    B, inplanes, planes, H, W = 2, 16, 8, 16, 16    # out channels = 4*planes = 32
    key = jax.random.PRNGKey(0)
    k_x, k_p = jax.random.split(key)
    x = jax.random.normal(k_x, (B, inplanes, H, W), jnp.float32)
    raw, kparams = init_bottleneck(k_p, inplanes, planes)

    fwd = jax.jit(bottleneck_forward)
    out = fwd(x, kparams)
    jax.block_until_ready(out)
    assert out.shape == (B, planes * OUTCHANNEL_RATIO, H, W), out.shape

    ref = bottleneck_ref(x, raw)
    err = float(jnp.max(jnp.abs(out - ref)))
    assert err < 5e-2, f"max |pallas - reference| = {err}"
    print("KERNEL_OK")
</pallas_src>

<mosaic_0001>
module attributes {stable_mosaic.version = 11 : i64} {
  func.func @_bottleneck_kernel(%arg0: i32, %arg1: memref<1x16x256xf32, #tpu.memory_space<vmem>>, %arg2: memref<8x16xf32, #tpu.memory_space<vmem>>, %arg3: memref<8x400xbf16, #tpu.memory_space<vmem>>, %arg4: memref<32x8xf32, #tpu.memory_space<vmem>>, %arg5: memref<400x256xf32, #tpu.memory_space<vmem>>, %arg6: memref<8x1xf32, #tpu.memory_space<vmem>>, %arg7: memref<8x1xf32, #tpu.memory_space<vmem>>, %arg8: memref<32x1xf32, #tpu.memory_space<vmem>>, %arg9: memref<1x32x256xf32, #tpu.memory_space<vmem>>, %arg10: memref<400x256xbf16, #tpu.memory_space<vmem>>) attributes {dimension_semantics = [#tpu.dimension_semantics<parallel>], iteration_bounds = array<i64: 2>, scalar_prefetch = 0 : i64, scratch_operands = 1 : i64, tpu.core_type = #tpu.core_type<tc>, window_params = [{transform_indices = @transform_0, window_bounds = array<i64: 1, 16, 256>}, {pipeline_mode = #tpu.pipeline_mode<synchronous>, transform_indices = @transform_1, window_bounds = array<i64: 8, 16>}, {pipeline_mode = #tpu.pipeline_mode<synchronous>, transform_indices = @transform_2, window_bounds = array<i64: 8, 400>}, {pipeline_mode = #tpu.pipeline_mode<synchronous>, transform_indices = @transform_3, window_bounds = array<i64: 32, 8>}, {pipeline_mode = #tpu.pipeline_mode<synchronous>, transform_indices = @transform_4, window_bounds = array<i64: 400, 256>}, {pipeline_mode = #tpu.pipeline_mode<synchronous>, transform_indices = @transform_5, window_bounds = array<i64: 8, 1>}, {pipeline_mode = #tpu.pipeline_mode<synchronous>, transform_indices = @transform_6, window_bounds = array<i64: 8, 1>}, {pipeline_mode = #tpu.pipeline_mode<synchronous>, transform_indices = @transform_7, window_bounds = array<i64: 32, 1>}, {transform_indices = @transform_8, window_bounds = array<i64: 1, 32, 256>}]} {
    %c0 = arith.constant 0 : index
    %c0_0 = arith.constant 0 : index
    %c0_1 = arith.constant 0 : index
    %0 = vector.load %arg1[%c0, %c0_0, %c0_1] : memref<1x16x256xf32, #tpu.memory_space<vmem>>, vector<1x16x256xf32>
    %1 = vector.shape_cast %0 : vector<1x16x256xf32> to vector<16x256xf32>
    %c0_2 = arith.constant 0 : index
    %c0_3 = arith.constant 0 : index
    %2 = vector.load %arg2[%c0_2, %c0_3] : memref<8x16xf32, #tpu.memory_space<vmem>>, vector<8x16xf32>
    %cst = arith.constant dense<0.000000e+00> : vector<8x256xf32>
    %3 = tpu.matmul %2, %1, %cst {dimension_numbers = #tpu.dot_dimension_numbers<[1], [0], [0], [1], [0, 0, 1, 1], [], []>} : vector<8x16xf32>, vector<16x256xf32>, vector<8x256xf32> -> vector<8x256xf32>
    %c0_4 = arith.constant 0 : index
    %c0_5 = arith.constant 0 : index
    %4 = vector.load %arg6[%c0_4, %c0_5] : memref<8x1xf32, #tpu.memory_space<vmem>>, vector<8x1xf32>
    %5 = vector.broadcast %4 : vector<8x1xf32> to vector<8x256xf32>
    %6 = arith.addf %3, %5 : vector<8x256xf32>
    %cst_6 = arith.constant 0.000000e+00 : f32
    %7 = vector.broadcast %cst_6 : f32 to vector<8x256xf32>
    %8 = arith.maximumf %6, %7 : vector<8x256xf32>
    %c51_i32 = arith.constant 51 : i32
    %9 = tpu.dynamic_rotate %8 by %c51_i32 dim 1 : vector<8x256xf32>, i32 -> vector<8x256xf32>
    %c50_i32 = arith.constant 50 : i32
    %10 = tpu.dynamic_rotate %8 by %c50_i32 dim 1 : vector<8x256xf32>, i32 -> vector<8x256xf32>
    %11 = tpu.concatenate %9, %10 in 0 : vector<8x256xf32>, vector<8x256xf32> -> vector<16x256xf32>
    %c0_7 = arith.constant 0 : index
    %c0_8 = arith.constant 0 : index
    %12 = vector.load %arg5[%c0_7, %c0_8] : memref<400x256xf32, #tpu.memory_space<vmem>>, vector<16x256xf32>
    %13 = arith.mulf %11, %12 : vector<16x256xf32>
    %14 = arith.truncf %13 : vector<16x256xf32> to vector<16x256xbf16>
    %c0_9 = arith.constant 0 : index
    %c0_10 = arith.constant 0 : index
    %15 = vector.load %arg10[%c0_9, %c0_10] : memref<400x256xbf16, #tpu.memory_space<vmem>>, vector<16x256xbf16>
    tpu.vector_store %arg10[%c0_9, %c0_10], %14 {strides = array<i32>} : memref<400x256xbf16, #tpu.memory_space<vmem>>, vector<16x256xbf16>,
    %c49_i32 = arith.constant 49 : i32
    %16 = tpu.dynamic_rotate %8 by %c49_i32 dim 1 : vector<8x256xf32>, i32 -> vector<8x256xf32>
    %c48_i32 = arith.constant 48 : i32
    %17 = tpu.dynamic_rotate %8 by %c48_i32 dim 1 : vector<8x256xf32>, i32 -> vector<8x256xf32>
    %18 = tpu.concatenate %16, %17 in 0 : vector<8x256xf32>, vector<8x256xf32> -> vector<16x256xf32>
    %c16 = arith.constant 16 : index
    %c0_11 = arith.constant 0 : index
    %19 = vector.load %arg5[%c16, %c0_11] : memref<400x256xf32, #tpu.memory_space<vmem>>, vector<16x256xf32>
    %20 = arith.mulf %18, %19 : vector<16x256xf32>
    %21 = arith.truncf %20 : vector<16x256xf32> to vector<16x256xbf16>
    %c16_12 = arith.constant 16 : index
    %c0_13 = arith.constant 0 : index
    %22 = vector.load %arg10[%c16_12, %c0_13] : memref<400x256xbf16, #tpu.memory_space<vmem>>, vector<16x256xbf16>
    tpu.vector_store %arg10[%c16_12, %c0_13], %21 {strides = array<i32>} : memref<400x256xbf16, #tpu.memory_space<vmem>>, vector<16x256xbf16>,
    %c47_i32 = arith.constant 47 : i32
    %23 = tpu.dynamic_rotate %8 by %c47_i32 dim 1 : vector<8x256xf32>, i32 -> vector<8x256xf32>
    %c46_i32 = arith.constant 46 : i32
    %24 = tpu.dynamic_rotate %8 by %c46_i32 dim 1 : vector<8x256xf32>, i32 -> vector<8x256xf32>
    %25 = tpu.concatenate %23, %24 in 0 : vector<8x256xf32>, vector<8x256xf32> -> vector<16x256xf32>
    %c32 = arith.constant 32 : index
    %c0_14 = arith.constant 0 : index
    %26 = vector.load %arg5[%c32, %c0_14] : memref<400x256xf32, #tpu.memory_space<vmem>>, vector<16x256xf32>
    %27 = arith.mulf %25, %26 : vector<16x256xf32>
    %28 = arith.truncf %27 : vector<16x256xf32> to vector<16x256xbf16>
    %c32_15 = arith.constant 32 : index
    %c0_16 = arith.constant 0 : index
    %29 = vector.load %arg10[%c32_15, %c0_16] : memref<400x256xbf16, #tpu.memory_space<vmem>>, vector<16x256xbf16>
    tpu.vector_store %arg10[%c32_15, %c0_16], %28 {strides = array<i32>} : memref<400x256xbf16, #tpu.memory_space<vmem>>, vector<16x256xbf16>,
    %c45_i32 = arith.constant 45 : i32
    %30 = tpu.dynamic_rotate %8 by %c45_i32 dim 1 : vector<8x256xf32>, i32 -> vector<8x256xf32>
    %c35_i32 = arith.constant 35 : i32
    %31 = tpu.dynamic_rotate %8 by %c35_i32 dim 1 : vector<8x256xf32>, i32 -> vector<8x256xf32>
    %32 = tpu.concatenate %30, %31 in 0 : vector<8x256xf32>, vector<8x256xf32> -> vector<16x256xf32>
    %c48 = arith.constant 48 : index
    %c0_17 = arith.constant 0 : index
    %33 = vector.load %arg5[%c48, %c0_17] : memref<400x256xf32, #tpu.memory_space<vmem>>, vector<16x256xf32>
    %34 = arith.mulf %32, %33 : vector<16x256xf32>
    %35 = arith.truncf %34 : vector<16x256xf32> to vector<16x256xbf16>
    %c48_18 = arith.constant 48 : index
    %c0_19 = arith.constant 0 : index
    %36 = vector.load %arg10[%c48_18, %c0_19] : memref<400x256xbf16, #tpu.memory_space<vmem>>, vector<16x256xbf16>
    tpu.vector_store %arg10[%c48_18, %c0_19], %35 {strides = array<i32>} : memref<400x256xbf16, #tpu.memory_space<vmem>>, vector<16x256xbf16>,
    %c34_i32 = arith.constant 34 : i32
    %37 = tpu.dynamic_rotate %8 by %c34_i32 dim 1 : vector<8x256xf32>, i32 -> vector<8x256xf32>
    %c33_i32 = arith.constant 33 : i32
    %38 = tpu.dynamic_rotate %8 by %c33_i32 dim 1 : vector<8x256xf32>, i32 -> vector<8x256xf32>
    %39 = tpu.concatenate %37, %38 in 0 : vector<8x256xf32>, vector<8x256xf32> -> vector<16x256xf32>
    %c64 = arith.constant 64 : index
    %c0_20 = arith.constant 0 : index
    %40 = vector.load %arg5[%c64, %c0_20] : memref<400x256xf32, #tpu.memory_space<vmem>>, vector<16x256xf32>
    %41 = arith.mulf %39, %40 : vector<16x256xf32>
    %42 = arith.truncf %41 : vector<16x256xf32> to vector<16x256xbf16>
    %c64_21 = arith.constant 64 : index
    %c0_22 = arith.constant 0 : index
    %43 = vector.load %arg10[%c64_21, %c0_22] : memref<400x256xbf16, #tpu.memory_space<vmem>>, vector<16x256xbf16>
    tpu.vector_store %arg10[%c64_21, %c0_22], %42 {strides = array<i32>} : memref<400x256xbf16, #tpu.memory_space<vmem>>, vector<16x256xbf16>,
    %c32_i32 = arith.constant 32 : i32
    %44 = tpu.dynamic_rotate %8 by %c32_i32 dim 1 : vector<8x256xf32>, i32 -> vector<8x256xf32>
    %c31_i32 = arith.constant 31 : i32
    %45 = tpu.dynamic_rotate %8 by %c31_i32 dim 1 : vector<8x256xf32>, i32 -> vector<8x256xf32>
    %46 = tpu.concatenate %44, %45 in 0 : vector<8x256xf32>, vector<8x256xf32> -> vector<16x256xf32>
    %c80 = arith.constant 80 : index
    %c0_23 = arith.constant 0 : index
    %47 = vector.load %arg5[%c80, %c0_23] : memref<400x256xf32, #tpu.memory_space<vmem>>, vector<16x256xf32>
    %48 = arith.mulf %46, %47 : vector<16x256xf32>
    %49 = arith.truncf %48 : vector<16x256xf32> to vector<16x256xbf16>
    %c80_24 = arith.constant 80 : index
    %c0_25 = arith.constant 0 : index
    %50 = vector.load %arg10[%c80_24, %c0_25] : memref<400x256xbf16, #tpu.memory_space<vmem>>, vector<16x256xbf16>
    tpu.vector_store %arg10[%c80_24, %c0_25], %49 {strides = array<i32>} : memref<400x256xbf16, #tpu.memory_space<vmem>>, vector<16x256xbf16>,
    %c30_i32 = arith.constant 30 : i32
    %51 = tpu.dynamic_rotate %8 by %c30_i32 dim 1 : vector<8x256xf32>, i32 -> vector<8x256xf32>
    %c29_i32 = arith.constant 29 : i32
    %52 = tpu.dynamic_rotate %8 by %c29_i32 dim 1 : vector<8x256xf32>, i32 -> vector<8x256xf32>
    %53 = tpu.concatenate %51, %52 in 0 : vector<8x256xf32>, vector<8x256xf32> -> vector<16x256xf32>
    %c96 = arith.constant 96 : index
    %c0_26 = arith.constant 0 : index
    %54 = vector.load %arg5[%c96, %c0_26] : memref<400x256xf32, #tpu.memory_space<vmem>>, vector<16x256xf32>
    %55 = arith.mulf %53, %54 : vector<16x256xf32>
    %56 = arith.truncf %55 : vector<16x256xf32> to vector<16x256xbf16>
    %c96_27 = arith.constant 96 : index
    %c0_28 = arith.constant 0 : index
    %57 = vector.load %arg10[%c96_27, %c0_28] : memref<400x256xbf16, #tpu.memory_space<vmem>>, vector<16x256xbf16>
    tpu.vector_store %arg10[%c96_27, %c0_28], %56 {strides = array<i32>} : memref<400x256xbf16, #tpu.memory_space<vmem>>, vector<16x256xbf16>,
    %c19_i32 = arith.constant 19 : i32
    %58 = tpu.dynamic_rotate %8 by %c19_i32 dim 1 : vector<8x256xf32>, i32 -> vector<8x256xf32>
    %c18_i32 = arith.constant 18 : i32
    %59 = tpu.dynamic_rotate %8 by %c18_i32 dim 1 : vector<8x256xf32>, i32 -> vector<8x256xf32>
    %60 = tpu.concatenate %58, %59 in 0 : vector<8x256xf32>, vector<8x256xf32> -> vector<16x256xf32>
    %c112 = arith.constant 112 : index
    %c0_29 = arith.constant 0 : index
    %61 = vector.load %arg5[%c112, %c0_29] : memref<400x256xf32, #tpu.memory_space<vmem>>, vector<16x256xf32>
    %62 = arith.mulf %60, %61 : vector<16x256xf32>
    %63 = arith.truncf %62 : vector<16x256xf32> to vector<16x256xbf16>
    %c112_30 = arith.constant 112 : index
    %c0_31 = arith.constant 0 : index
    %64 = vector.load %arg10[%c112_30, %c0_31] : memref<400x256xbf16, #tpu.memory_space<vmem>>, vector<16x256xbf16>
    tpu.vector_store %arg10[%c112_30, %c0_31], %63 {strides = array<i32>} : memref<400x256xbf16, #tpu.memory_space<vmem>>, vector<16x256xbf16>,
    %c17_i32 = arith.constant 17 : i32
    %65 = tpu.dynamic_rotate %8 by %c17_i32 dim 1 : vector<8x256xf32>, i32 -> vector<8x256xf32>
    %c16_i32 = arith.constant 16 : i32
    %66 = tpu.dynamic_rotate %8 by %c16_i32 dim 1 : vector<8x256xf32>, i32 -> vector<8x256xf32>
    %67 = tpu.concatenate %65, %66 in 0 : vector<8x256xf32>, vector<8x256xf32> -> vector<16x256xf32>
    %c128 = arith.constant 128 : index
    %c0_32 = arith.constant 0 : index
    %68 = vector.load %arg5[%c128, %c0_32] : memref<400x256xf32, #tpu.memory_space<vmem>>, vector<16x256xf32>
    %69 = arith.mulf %67, %68 : vector<16x256xf32>
    %70 = arith.truncf %69 : vector<16x256xf32> to vector<16x256xbf16>
    %c128_33 = arith.constant 128 : index
    %c0_34 = arith.constant 0 : index
    %71 = vector.load %arg10[%c128_33, %c0_34] : memref<400x256xbf16, #tpu.memory_space<vmem>>, vector<16x256xbf16>
    tpu.vector_store %arg10[%c128_33, %c0_34], %70 {strides = array<i32>} : memref<400x256xbf16, #tpu.memory_space<vmem>>, vector<16x256xbf16>,
    %c15_i32 = arith.constant 15 : i32
    %72 = tpu.dynamic_rotate %8 by %c15_i32 dim 1 : vector<8x256xf32>, i32 -> vector<8x256xf32>
    %c14_i32 = arith.constant 14 : i32
    %73 = tpu.dynamic_rotate %8 by %c14_i32 dim 1 : vector<8x256xf32>, i32 -> vector<8x256xf32>
    %74 = tpu.concatenate %72, %73 in 0 : vector<8x256xf32>, vector<8x256xf32> -> vector<16x256xf32>
    %c144 = arith.constant 144 : index
    %c0_35 = arith.constant 0 : index
    %75 = vector.load %arg5[%c144, %c0_35] : memref<400x256xf32, #tpu.memory_space<vmem>>, vector<16x256xf32>
    %76 = arith.mulf %74, %75 : vector<16x256xf32>
    %77 = arith.truncf %76 : vector<16x256xf32> to vector<16x256xbf16>
    %c144_36 = arith.constant 144 : index
    %c0_37 = arith.constant 0 : index
    %78 = vector.load %arg10[%c144_36, %c0_37] : memref<400x256xbf16, #tpu.memory_space<vmem>>, vector<16x256xbf16>
    tpu.vector_store %arg10[%c144_36, %c0_37], %77 {strides = array<i32>} : memref<400x256xbf16, #tpu.memory_space<vmem>>, vector<16x256xbf16>,
    %c13_i32 = arith.constant 13 : i32
    %79 = tpu.dynamic_rotate %8 by %c13_i32 dim 1 : vector<8x256xf32>, i32 -> vector<8x256xf32>
    %c3_i32 = arith.constant 3 : i32
    %80 = tpu.dynamic_rotate %8 by %c3_i32 dim 1 : vector<8x256xf32>, i32 -> vector<8x256xf32>
    %81 = tpu.concatenate %79, %80 in 0 : vector<8x256xf32>, vector<8x256xf32> -> vector<16x256xf32>
    %c160 = arith.constant 160 : index
    %c0_38 = arith.constant 0 : index
    %82 = vector.load %arg5[%c160, %c0_38] : memref<400x256xf32, #tpu.memory_space<vmem>>, vector<16x256xf32>
    %83 = arith.mulf %81, %82 : vector<16x256xf32>
    %84 = arith.truncf %83 : vector<16x256xf32> to vector<16x256xbf16>
    %c160_39 = arith.constant 160 : index
    %c0_40 = arith.constant 0 : index
    %85 = vector.load %arg10[%c160_39, %c0_40] : memref<400x256xbf16, #tpu.memory_space<vmem>>, vector<16x256xbf16>
    tpu.vector_store %arg10[%c160_39, %c0_40], %84 {strides = array<i32>} : memref<400x256xbf16, #tpu.memory_space<vmem>>, vector<16x256xbf16>,
    %c2_i32 = arith.constant 2 : i32
    %86 = tpu.dynamic_rotate %8 by %c2_i32 dim 1 : vector<8x256xf32>, i32 -> vector<8x256xf32>
    %c1_i32 = arith.constant 1 : i32
    %87 = tpu.dynamic_rotate %8 by %c1_i32 dim 1 : vector<8x256xf32>, i32 -> vector<8x256xf32>
    %88 = tpu.concatenate %86, %87 in 0 : vector<8x256xf32>, vector<8x256xf32> -> vector<16x256xf32>
    %c176 = arith.constant 176 : index
    %c0_41 = arith.constant 0 : index
    %89 = vector.load %arg5[%c176, %c0_41] : memref<400x256xf32, #tpu.memory_space<vmem>>, vector<16x256xf32>
    %90 = arith.mulf %88, %89 : vector<16x256xf32>
    %91 = arith.truncf %90 : vector<16x256xf32> to vector<16x256xbf16>
    %c176_42 = arith.constant 176 : index
    %c0_43 = arith.constant 0 : index
    %92 = vector.load %arg10[%c176_42, %c0_43] : memref<400x256xbf16, #tpu.memory_space<vmem>>, vector<16x256xbf16>
    tpu.vector_store %arg10[%c176_42, %c0_43], %91 {strides = array<i32>} : memref<400x256xbf16, #tpu.memory_space<vmem>>, vector<16x256xbf16>,
    %c255_i32 = arith.constant 255 : i32
    %93 = tpu.dynamic_rotate %8 by %c255_i32 dim 1 : vector<8x256xf32>, i32 -> vector<8x256xf32>
    %94 = tpu.concatenate %8, %93 in 0 : vector<8x256xf32>, vector<8x256xf32> -> vector<16x256xf32>
    %c192 = arith.constant 192 : index
    %c0_44 = arith.constant 0 : index
    %95 = vector.load %arg5[%c192, %c0_44] : memref<400x256xf32, #tpu.memory_space<vmem>>, vector<16x256xf32>
    %96 = arith.mulf %94, %95 : vector<16x256xf32>
    %97 = arith.truncf %96 : vector<16x256xf32> to vector<16x256xbf16>
    %c192_45 = arith.constant 192 : index
    %c0_46 = arith.constant 0 : index
    %98 = vector.load %arg10[%c192_45, %c0_46] : memref<400x256xbf16, #tpu.memory_space<vmem>>, vector<16x256xbf16>
    tpu.vector_store %arg10[%c192_45, %c0_46], %97 {strides = array<i32>} : memref<400x256xbf16, #tpu.memory_space<vmem>>, vector<16x256xbf16>,
    %c254_i32 = arith.constant 254 : i32
    %99 = tpu.dynamic_rotate %8 by %c254_i32 dim 1 : vector<8x256xf32>, i32 -> vector<8x256xf32>
    %c253_i32 = arith.constant 253 : i32
    %100 = tpu.dynamic_rotate %8 by %c253_i32 dim 1 : vector<8x256xf32>, i32 -> vector<8x256xf32>
    %101 = tpu.concatenate %99, %100 in 0 : vector<8x256xf32>, vector<8x256xf32> -> vector<16x256xf32>
    %c208 = arith.constant 208 : index
    %c0_47 = arith.constant 0 : index
    %102 = vector.load %arg5[%c208, %c0_47] : memref<400x256xf32, #tpu.memory_space<vmem>>, vector<16x256xf32>
    %103 = arith.mulf %101, %102 : vector<16x256xf32>
    %104 = arith.truncf %103 : vector<16x256xf32> to vector<16x256xbf16>
    %c208_48 = arith.constant 208 : index
    %c0_49 = arith.constant 0 : index
    %105 = vector.load %arg10[%c208_48, %c0_49] : memref<400x256xbf16, #tpu.memory_space<vmem>>, vector<16x256xbf16>
    tpu.vector_store %arg10[%c208_48, %c0_49], %104 {strides = array<i32>} : memref<400x256xbf16, #tpu.memory_space<vmem>>, vector<16x256xbf16>,
    %c243_i32 = arith.constant 243 : i32
    %106 = tpu.dynamic_rotate %8 by %c243_i32 dim 1 : vector<8x256xf32>, i32 -> vector<8x256xf32>
    %c242_i32 = arith.constant 242 : i32
    %107 = tpu.dynamic_rotate %8 by %c242_i32 dim 1 : vector<8x256xf32>, i32 -> vector<8x256xf32>
    %108 = tpu.concatenate %106, %107 in 0 : vector<8x256xf32>, vector<8x256xf32> -> vector<16x256xf32>
    %c224 = arith.constant 224 : index
    %c0_50 = arith.constant 0 : index
    %109 = vector.load %arg5[%c224, %c0_50] : memref<400x256xf32, #tpu.memory_space<vmem>>, vector<16x256xf32>
    %110 = arith.mulf %108, %109 : vector<16x256xf32>
    %111 = arith.truncf %110 : vector<16x256xf32> to vector<16x256xbf16>
    %c224_51 = arith.constant 224 : index
    %c0_52 = arith.constant 0 : index
    %112 = vector.load %arg10[%c224_51, %c0_52] : memref<400x256xbf16, #tpu.memory_space<vmem>>, vector<16x256xbf16>
    tpu.vector_store %arg10[%c224_51, %c0_52], %111 {strides = array<i32>} : memref<400x256xbf16, #tpu.memory_space<vmem>>, vector<16x256xbf16>,
    %c241_i32 = arith.constant 241 : i32
    %113 = tpu.dynamic_rotate %8 by %c241_i32 dim 1 : vector<8x256xf32>, i32 -> vector<8x256xf32>
    %c240_i32 = arith.constant 240 : i32
    %114 = tpu.dynamic_rotate %8 by %c240_i32 dim 1 : vector<8x256xf32>, i32 -> vector<8x256xf32>
    %115 = tpu.concatenate %113, %114 in 0 : vector<8x256xf32>, vector<8x256xf32> -> vector<16x256xf32>
    %c240 = arith.constant 240 : index
    %c0_53 = arith.constant 0 : index
    %116 = vector.load %arg5[%c240, %c0_53] : memref<400x256xf32, #tpu.memory_space<vmem>>, vector<16x256xf32>
    %117 = arith.mulf %115, %116 : vector<16x256xf32>
    %118 = arith.truncf %117 : vector<16x256xf32> to vector<16x256xbf16>
    %c240_54 = arith.constant 240 : index
    %c0_55 = arith.constant 0 : index
    %119 = vector.load %arg10[%c240_54, %c0_55] : memref<400x256xbf16, #tpu.memory_space<vmem>>, vector<16x256xbf16>
    tpu.vector_store %arg10[%c240_54, %c0_55], %118 {strides = array<i32>} : memref<400x256xbf16, #tpu.memory_space<vmem>>, vector<16x256xbf16>,
    %c239_i32 = arith.constant 239 : i32
    %120 = tpu.dynamic_rotate %8 by %c239_i32 dim 1 : vector<8x256xf32>, i32 -> vector<8x256xf32>
    %c238_i32 = arith.constant 238 : i32
    %121 = tpu.dynamic_rotate %8 by %c238_i32 dim 1 : vector<8x256xf32>, i32 -> vector<8x256xf32>
    %122 = tpu.concatenate %120, %121 in 0 : vector<8x256xf32>, vector<8x256xf32> -> vector<16x256xf32>
    %c256 = arith.constant 256 : index
    %c0_56 = arith.constant 0 : index
    %123 = vector.load %arg5[%c256, %c0_56] : memref<400x256xf32, #tpu.memory_space<vmem>>, vector<16x256xf32>
    %124 = arith.mulf %122, %123 : vector<16x256xf32>
    %125 = arith.truncf %124 : vector<16x256xf32> to vector<16x256xbf16>
    %c256_57 = arith.constant 256 : index
    %c0_58 = arith.constant 0 : index
    %126 = vector.load %arg10[%c256_57, %c0_58] : memref<400x256xbf16, #tpu.memory_space<vmem>>, vector<16x256xbf16>
    tpu.vector_store %arg10[%c256_57, %c0_58], %125 {strides = array<i32>} : memref<400x256xbf16, #tpu.memory_space<vmem>>, vector<16x256xbf16>,
    %c237_i32 = arith.constant 237 : i32
    %127 = tpu.dynamic_rotate %8 by %c237_i32 dim 1 : vector<8x256xf32>, i32 -> vector<8x256xf32>
    %c227_i32 = arith.constant 227 : i32
    %128 = tpu.dynamic_rotate %8 by %c227_i32 dim 1 : vector<8x256xf32>, i32 -> vector<8x256xf32>
    %129 = tpu.concatenate %127, %128 in 0 : vector<8x256xf32>, vector<8x256xf32> -> vector<16x256xf32>
    %c272 = arith.constant 272 : index
    %c0_59 = arith.constant 0 : index
    %130 = vector.load %arg5[%c272, %c0_59] : memref<400x256xf32, #tpu.memory_space<vmem>>, vector<16x256xf32>
    %131 = arith.mulf %129, %130 : vector<16x256xf32>
    %132 = arith.truncf %131 : vector<16x256xf32> to vector<16x256xbf16>
    %c272_60 = arith.constant 272 : index
    %c0_61 = arith.constant 0 : index
    %133 = vector.load %arg10[%c272_60, %c0_61] : memref<400x256xbf16, #tpu.memory_space<vmem>>, vector<16x256xbf16>
    tpu.vector_store %arg10[%c272_60, %c0_61], %132 {strides = array<i32>} : memref<400x256xbf16, #tpu.memory_space<vmem>>, vector<16x256xbf16>,
    %c226_i32 = arith.constant 226 : i32
    %134 = tpu.dynamic_rotate %8 by %c226_i32 dim 1 : vector<8x256xf32>, i32 -> vector<8x256xf32>
    %c225_i32 = arith.constant 225 : i32
    %135 = tpu.dynamic_rotate %8 by %c225_i32 dim 1 : vector<8x256xf32>, i32 -> vector<8x256xf32>
    %136 = tpu.concatenate %134, %135 in 0 : vector<8x256xf32>, vector<8x256xf32> -> vector<16x256xf32>
    %c288 = arith.constant 288 : index
    %c0_62 = arith.constant 0 : index
    %137 = vector.load %arg5[%c288, %c0_62] : memref<400x256xf32, #tpu.memory_space<vmem>>, vector<16x256xf32>
    %138 = arith.mulf %136, %137 : vector<16x256xf32>
    %139 = arith.truncf %138 : vector<16x256xf32> to vector<16x256xbf16>
    %c288_63 = arith.constant 288 : index
    %c0_64 = arith.constant 0 : index
    %140 = vector.load %arg10[%c288_63, %c0_64] : memref<400x256xbf16, #tpu.memory_space<vmem>>, vector<16x256xbf16>
    tpu.vector_store %arg10[%c288_63, %c0_64], %139 {strides = array<i32>} : memref<400x256xbf16, #tpu.memory_space<vmem>>, vector<16x256xbf16>,
    %c224_i32 = arith.constant 224 : i32
    %141 = tpu.dynamic_rotate %8 by %c224_i32 dim 1 : vector<8x256xf32>, i32 -> vector<8x256xf32>
    %c223_i32 = arith.constant 223 : i32
    %142 = tpu.dynamic_rotate %8 by %c223_i32 dim 1 : vector<8x256xf32>, i32 -> vector<8x256xf32>
    %143 = tpu.concatenate %141, %142 in 0 : vector<8x256xf32>, vector<8x256xf32> -> vector<16x256xf32>
    %c304 = arith.constant 304 : index
    %c0_65 = arith.constant 0 : index
    %144 = vector.load %arg5[%c304, %c0_65] : memref<400x256xf32, #tpu.memory_space<vmem>>, vector<16x256xf32>
    %145 = arith.mulf %143, %144 : vector<16x256xf32>
    %146 = arith.truncf %145 : vector<16x256xf32> to vector<16x256xbf16>
    %c304_66 = arith.constant 304 : index
    %c0_67 = arith.constant 0 : index
    %147 = vector.load %arg10[%c304_66, %c0_67] : memref<400x256xbf16, #tpu.memory_space<vmem>>, vector<16x256xbf16>
    tpu.vector_store %arg10[%c304_66, %c0_67], %146 {strides = array<i32>} : memref<400x256xbf16, #tpu.memory_space<vmem>>, vector<16x256xbf16>,
    %c222_i32 = arith.constant 222 : i32
    %148 = tpu.dynamic_rotate %8 by %c222_i32 dim 1 : vector<8x256xf32>, i32 -> vector<8x256xf32>
    %c221_i32 = arith.constant 221 : i32
    %149 = tpu.dynamic_rotate %8 by %c221_i32 dim 1 : vector<8x256xf32>, i32 -> vector<8x256xf32>
    %150 = tpu.concatenate %148, %149 in 0 : vector<8x256xf32>, vector<8x256xf32> -> vector<16x256xf32>
    %c320 = arith.constant 320 : index
    %c0_68 = arith.constant 0 : index
    %151 = vector.load %arg5[%c320, %c0_68] : memref<400x256xf32, #tpu.memory_space<vmem>>, vector<16x256xf32>
    %152 = arith.mulf %150, %151 : vector<16x256xf32>
    %153 = arith.truncf %152 : vector<16x256xf32> to vector<16x256xbf16>
    %c320_69 = arith.constant 320 : index
    %c0_70 = arith.constant 0 : index
    %154 = vector.load %arg10[%c320_69, %c0_70] : memref<400x256xbf16, #tpu.memory_space<vmem>>, vector<16x256xbf16>
    tpu.vector_store %arg10[%c320_69, %c0_70], %153 {strides = array<i32>} : memref<400x256xbf16, #tpu.memory_space<vmem>>, vector<16x256xbf16>,
    %c211_i32 = arith.constant 211 : i32
    %155 = tpu.dynamic_rotate %8 by %c211_i32 dim 1 : vector<8x256xf32>, i32 -> vector<8x256xf32>
    %c210_i32 = arith.constant 210 : i32
    %156 = tpu.dynamic_rotate %8 by %c210_i32 dim 1 : vector<8x256xf32>, i32 -> vector<8x256xf32>
    %157 = tpu.concatenate %155, %156 in 0 : vector<8x256xf32>, vector<8x256xf32> -> vector<16x256xf32>
    %c336 = arith.constant 336 : index
    %c0_71 = arith.constant 0 : index
    %158 = vector.load %arg5[%c336, %c0_71] : memref<400x256xf32, #tpu.memory_space<vmem>>, vector<16x256xf32>
    %159 = arith.mulf %157, %158 : vector<16x256xf32>
    %160 = arith.truncf %159 : vector<16x256xf32> to vector<16x256xbf16>
    %c336_72 = arith.constant 336 : index
    %c0_73 = arith.constant 0 : index
    %161 = vector.load %arg10[%c336_72, %c0_73] : memref<400x256xbf16, #tpu.memory_space<vmem>>, vector<16x256xbf16>
    tpu.vector_store %arg10[%c336_72, %c0_73], %160 {strides = array<i32>} : memref<400x256xbf16, #tpu.memory_space<vmem>>, vector<16x256xbf16>,
    %c209_i32 = arith.constant 209 : i32
    %162 = tpu.dynamic_rotate %8 by %c209_i32 dim 1 : vector<8x256xf32>, i32 -> vector<8x256xf32>
    %c208_i32 = arith.constant 208 : i32
    %163 = tpu.dynamic_rotate %8 by %c208_i32 dim 1 : vector<8x256xf32>, i32 -> vector<8x256xf32>
    %164 = tpu.concatenate %162, %163 in 0 : vector<8x256xf32>, vector<8x256xf32> -> vector<16x256xf32>
    %c352 = arith.constant 352 : index
    %c0_74 = arith.constant 0 : index
    %165 = vector.load %arg5[%c352, %c0_74] : memref<400x256xf32, #tpu.memory_space<vmem>>, vector<16x256xf32>
    %166 = arith.mulf %164, %165 : vector<16x256xf32>
    %167 = arith.truncf %166 : vector<16x256xf32> to vector<16x256xbf16>
    %c352_75 = arith.constant 352 : index
    %c0_76 = arith.constant 0 : index
    %168 = vector.load %arg10[%c352_75, %c0_76] : memref<400x256xbf16, #tpu.memory_space<vmem>>, vector<16x256xbf16>
    tpu.vector_store %arg10[%c352_75, %c0_76], %167 {strides = array<i32>} : memref<400x256xbf16, #tpu.memory_space<vmem>>, vector<16x256xbf16>,
    %c207_i32 = arith.constant 207 : i32
    %169 = tpu.dynamic_rotate %8 by %c207_i32 dim 1 : vector<8x256xf32>, i32 -> vector<8x256xf32>
    %c206_i32 = arith.constant 206 : i32
    %170 = tpu.dynamic_rotate %8 by %c206_i32 dim 1 : vector<8x256xf32>, i32 -> vector<8x256xf32>
    %171 = tpu.concatenate %169, %170 in 0 : vector<8x256xf32>, vector<8x256xf32> -> vector<16x256xf32>
    %c368 = arith.constant 368 : index
    %c0_77 = arith.constant 0 : index
    %172 = vector.load %arg5[%c368, %c0_77] : memref<400x256xf32, #tpu.memory_space<vmem>>, vector<16x256xf32>
    %173 = arith.mulf %171, %172 : vector<16x256xf32>
    %174 = arith.truncf %173 : vector<16x256xf32> to vector<16x256xbf16>
    %c368_78 = arith.constant 368 : index
    %c0_79 = arith.constant 0 : index
    %175 = vector.load %arg10[%c368_78, %c0_79] : memref<400x256xbf16, #tpu.memory_space<vmem>>, vector<16x256xbf16>
    tpu.vector_store %arg10[%c368_78, %c0_79], %174 {strides = array<i32>} : memref<400x256xbf16, #tpu.memory_space<vmem>>, vector<16x256xbf16>,
    %c205_i32 = arith.constant 205 : i32
    %176 = tpu.dynamic_rotate %8 by %c205_i32 dim 1 : vector<8x256xf32>, i32 -> vector<8x256xf32>
    %177 = tpu.concatenate %176, %8 in 0 : vector<8x256xf32>, vector<8x256xf32> -> vector<16x256xf32>
    %c384 = arith.constant 384 : index
    %c0_80 = arith.constant 0 : index
    %178 = vector.load %arg5[%c384, %c0_80] : memref<400x256xf32, #tpu.memory_space<vmem>>, vector<16x256xf32>
    %179 = arith.mulf %177, %178 : vector<16x256xf32>
    %180 = arith.truncf %179 : vector<16x256xf32> to vector<16x256xbf16>
    %c384_81 = arith.constant 384 : index
    %c0_82 = arith.constant 0 : index
    %181 = vector.load %arg10[%c384_81, %c0_82] : memref<400x256xbf16, #tpu.memory_space<vmem>>, vector<16x256xbf16>
    tpu.vector_store %arg10[%c384_81, %c0_82], %180 {strides = array<i32>} : memref<400x256xbf16, #tpu.memory_space<vmem>>, vector<16x256xbf16>,
    %c0_83 = arith.constant 0 : index
    %c0_84 = arith.constant 0 : index
    %182 = vector.load %arg3[%c0_83, %c0_84] : memref<8x400xbf16, #tpu.memory_space<vmem>>, vector<8x400xbf16>
    %c0_85 = arith.constant 0 : index
    %c0_86 = arith.constant 0 : index
    %183 = vector.load %arg10[%c0_85, %c0_86] : memref<400x256xbf16, #tpu.memory_space<vmem>>, vector<400x256xbf16>
    %cst_87 = arith.constant dense<0.000000e+00> : vector<8x256xf32>
    %184 = tpu.matmul %182, %183, %cst_87 {dimension_numbers = #tpu.dot_dimension_numbers<[1], [0], [0], [1], [0, 0, 1, 1], [], []>} : vector<8x400xbf16>, vector<400x256xbf16>, vector<8x256xf32> -> vector<8x256xf32>
    %c0_88 = arith.constant 0 : index
    %c0_89 = arith.constant 0 : index
    %185 = vector.load %arg7[%c0_88, %c0_89] : memref<8x1xf32, #tpu.memory_space<vmem>>, vector<8x1xf32>
    %186 = vector.broadcast %185 : vector<8x1xf32> to vector<8x256xf32>
    %187 = arith.addf %184, %186 : vector<8x256xf32>
    %cst_90 = arith.constant 0.000000e+00 : f32
    %188 = vector.broadcast %cst_90 : f32 to vector<8x256xf32>
    %189 = arith.maximumf %187, %188 : vector<8x256xf32>
    %c0_91 = arith.constant 0 : index
    %c0_92 = arith.constant 0 : index
    %190 = vector.load %arg4[%c0_91, %c0_92] : memref<32x8xf32, #tpu.memory_space<vmem>>, vector<32x8xf32>
    %cst_93 = arith.constant dense<0.000000e+00> : vector<32x256xf32>
    %191 = tpu.matmul %190, %189, %cst_93 {dimension_numbers = #tpu.dot_dimension_numbers<[1], [0], [0], [1], [0, 0, 1, 1], [], []>} : vector<32x8xf32>, vector<8x256xf32>, vector<32x256xf32> -> vector<32x256xf32>
    %c0_94 = arith.constant 0 : index
    %c0_95 = arith.constant 0 : index
    %192 = vector.load %arg8[%c0_94, %c0_95] : memref<32x1xf32, #tpu.memory_space<vmem>>, vector<32x1xf32>
    %193 = vector.broadcast %192 : vector<32x1xf32> to vector<32x256xf32>
    %194 = arith.addf %191, %193 : vector<32x256xf32>
    %195 = vector.extract_strided_slice %194 {offsets = [0, 0], sizes = [16, 256], strides = [1, 1]} : vector<32x256xf32> to vector<16x256xf32>
    %196 = arith.addf %195, %1 : vector<16x256xf32>
    %c0_96 = arith.constant 0 : index
    %c0_97 = arith.constant 0 : index
    %c0_98 = arith.constant 0 : index
    %197 = vector.load %arg9[%c0_96, %c0_97, %c0_98] : memref<1x32x256xf32, #tpu.memory_space<vmem>>, vector<1x16x256xf32>
    %198 = vector.shape_cast %197 : vector<1x16x256xf32> to vector<16x256xf32>
    %199 = vector.shape_cast %196 : vector<16x256xf32> to vector<1x16x256xf32>
    tpu.vector_store %arg9[%c0_96, %c0_97, %c0_98], %199 {strides = array<i32>} : memref<1x32x256xf32, #tpu.memory_space<vmem>>, vector<1x16x256xf32>,
    %200 = vector.extract_strided_slice %194 {offsets = [16, 0], sizes = [16, 256], strides = [1, 1]} : vector<32x256xf32> to vector<16x256xf32>
    %c0_99 = arith.constant 0 : index
    %c16_100 = arith.constant 16 : index
    %c0_101 = arith.constant 0 : index
    %201 = vector.load %arg9[%c0_99, %c16_100, %c0_101] : memref<1x32x256xf32, #tpu.memory_space<vmem>>, vector<1x16x256xf32>
    %202 = vector.shape_cast %201 : vector<1x16x256xf32> to vector<16x256xf32>
    %203 = vector.shape_cast %200 : vector<16x256xf32> to vector<1x16x256xf32>
    tpu.vector_store %arg9[%c0_99, %c16_100, %c0_101], %203 {strides = array<i32>} : memref<1x32x256xf32, #tpu.memory_space<vmem>>, vector<1x16x256xf32>,
    return
  }
  func.func @transform_0(%arg0: i32) -> (i32, i32, i32) {
    %c0_i32 = arith.constant 0 : i32
    %c0_i32_0 = arith.constant 0 : i32
    %c0_i32_1 = arith.constant 0 : i32
    return %arg0, %c0_i32, %c0_i32_0 : i32, i32, i32
  }
  func.func @transform_1(%arg0: i32) -> (i32, i32) {
    %c0_i32 = arith.constant 0 : i32
    %c0_i32_0 = arith.constant 0 : i32
    %c0_i32_1 = arith.constant 0 : i32
    return %c0_i32, %c0_i32_0 : i32, i32
  }
  func.func @transform_2(%arg0: i32) -> (i32, i32) {
    %c0_i32 = arith.constant 0 : i32
    %c0_i32_0 = arith.constant 0 : i32
    %c0_i32_1 = arith.constant 0 : i32
    return %c0_i32, %c0_i32_0 : i32, i32
  }
  func.func @transform_3(%arg0: i32) -> (i32, i32) {
    %c0_i32 = arith.constant 0 : i32
    %c0_i32_0 = arith.constant 0 : i32
    %c0_i32_1 = arith.constant 0 : i32
    return %c0_i32, %c0_i32_0 : i32, i32
  }
  func.func @transform_4(%arg0: i32) -> (i32, i32) {
    %c0_i32 = arith.constant 0 : i32
    %c0_i32_0 = arith.constant 0 : i32
    %c0_i32_1 = arith.constant 0 : i32
    return %c0_i32, %c0_i32_0 : i32, i32
  }
  func.func @transform_5(%arg0: i32) -> (i32, i32) {
    %c0_i32 = arith.constant 0 : i32
    %c0_i32_0 = arith.constant 0 : i32
    %c0_i32_1 = arith.constant 0 : i32
    return %c0_i32, %c0_i32_0 : i32, i32
  }
  func.func @transform_6(%arg0: i32) -> (i32, i32) {
    %c0_i32 = arith.constant 0 : i32
    %c0_i32_0 = arith.constant 0 : i32
    %c0_i32_1 = arith.constant 0 : i32
    return %c0_i32, %c0_i32_0 : i32, i32
  }
  func.func @transform_7(%arg0: i32) -> (i32, i32) {
    %c0_i32 = arith.constant 0 : i32
    %c0_i32_0 = arith.constant 0 : i32
    %c0_i32_1 = arith.constant 0 : i32
    return %c0_i32, %c0_i32_0 : i32, i32
  }
  func.func @transform_8(%arg0: i32) -> (i32, i32, i32) {
    %c0_i32 = arith.constant 0 : i32
    %c0_i32_0 = arith.constant 0 : i32
    %c0_i32_1 = arith.constant 0 : i32
    return %arg0, %c0_i32, %c0_i32_0 : i32, i32, i32
  }
}

</mosaic_0001>

<llo_original>
// kernel: bottleneck_forward.1
$region0: #{bottleneck_forward.1}
  #allocation0 [shape = 'u32[]', space=smem, size = 0x4, offset = 0x4, fixed_abs, tag = 'smem constant byte address 0x4 - core index']
  #allocation1 [shape = 'u32[144,128]{1,0:T(1,128)}', space=vmem, size = 0x12000, scoped, tag = 'internal scratch']
  #allocation2 [shape = 'bf16[400,256]{1,0:T(8,128)(2,1)}', space=vmem, size = 0x32000, scoped, tag = 'scratch operand']
  %s0 = inlined_call_operand.vmem [shape: f32[2,16,256], index: 0, kind: input, shape index: {}]
  %s1 = inlined_call_operand.vmem [shape: f32[8,16], index: 1, kind: input, shape index: {}]
  %s2 = inlined_call_operand.vmem [shape: bf16[8,400], index: 2, kind: input, shape index: {}]
  %s3 = inlined_call_operand.vmem [shape: f32[32,8], index: 3, kind: input, shape index: {}]
  %s4 = inlined_call_operand.hbm [shape: f32[400,256], index: 4, kind: input, shape index: {}]
  %s5 = inlined_call_operand.vmem [shape: f32[8,1], index: 5, kind: input, shape index: {}]
  %s6 = inlined_call_operand.vmem [shape: f32[8,1], index: 6, kind: input, shape index: {}]
  %s7 = inlined_call_operand.vmem [shape: f32[32,1], index: 7, kind: input, shape index: {}]
  %s8 = inlined_call_operand.vmem [shape: f32[2,32,256], index: 8, kind: output, shape index: {}]
  %s9 = sld [smem:[#allocation0]]
  $region69: #{bottleneck_forward.1} parent=0
    _
  %s11 = ssub.s32 1, %s9
  %s12 = scalar_select 0, %s11, %s9
  $region1: #{bottleneck_forward.1} parent=0
    #allocation3 [shape = 'u8[409600]{0}', space=vmem, size = 0x64000, scoped, tag = 'input window, operand 4, single buffered']
    #allocation4 [shape = 's32[2]{0}', space=sflag, size = 0x8, scoped, tag = 'scoped memory for bottleneck_forward.1']
    %13 = vsyncpa [#allocation4], 0
    loop: start=0, step=1, limit=4
    $region2: #{bottleneck_forward.1} parent=1 // loop_pre_header
      _
    $region3: #{bottleneck_forward.1} parent=1 // loop_header
      %s15 = sphi 0, %s19
      %p16 = scmp.ge.s32.totalorder %s15, 4
      %s25 = sphi 0, %s27
      %s28 = sphi 0, %s25
      %s29 = sphi 0, %s28
      %s45 = sphi 0, %s29
      %s49 = sphi 0, %s49
      %s51 = sphi 0, %s49
      %s52 = sphi 0, %s51
      %s66 = sphi 0, %s52
      %s70 = sphi 0, %s70
      %s72 = sphi 0, %s70
      %s73 = sphi 0, %s72
      %s87 = sphi 0, %s73
      %s91 = sphi 0, %s91
      %s93 = sphi 0, %s91
      %s94 = sphi 0, %s93
      %s108 = sphi 0, %s94
      %s112 = sphi 0, %s112
      %s114 = sphi 0, %s112
      %s115 = sphi 0, %s114
      %s129 = sphi 0, %s115
      %s133 = sphi 0, %s133
      %s135 = sphi 0, %s133
      %s136 = sphi 0, %s135
      %s150 = sphi 0, %s136
      %s154 = sphi 0, %s154
      %s156 = sphi 0, %s154
      %s157 = sphi 0, %s156
      %s171 = sphi 0, %s157
      %s175 = sphi 0, %s175
      %s177 = sphi 0, %s175
      %s178 = sphi 0, %s177
      %s192 = sphi 0, %s178
      %s198 = sphi 0, %s200
      %s201 = sphi 0, %s198
      %s202 = sphi 0, %s201
      %s218 = sphi 0, %s202
    $region4: #{bottleneck_forward.1} parent=1 // loop_header_branch
      %18 = sbr.rel (%p16) target = $region8
    $region5: #{bottleneck_forward.1} parent=1 // loop_body
      %s20 = ssub.s32 %s15, 1
      %s21 = ssub.s32 %s15, 2
      %s22 = sadd.s32 %s15, 1
      %s23 = ssub.s32 %s15, %s22
      %p24 = scmp.eq.s32.totalorder %s23, 0
      %s26 = sadd.s32 %s25, 1
      %s27 = scalar_select %p24, %s25, %s26
      %p30 = pneg %p24
      %p31 = scmp.eq.s32.totalorder %s15, 1
      %p32 = por %p30, %p31
      %p33 = scmp.ne.s32.totalorder %s25, %s28
      %p34 = scmp.eq.s32.totalorder %s15, 0
      %p35 = por %p33, %p34
      %p36 = scmp.ne.s32.totalorder %s25, %s28
      %p37 = scmp.eq.s32.totalorder %s20, 1
      %p38 = por %p36, %p37
      %p39 = scmp.ne.s32.totalorder %s28, %s29
      %p40 = scmp.eq.s32.totalorder %s20, 0
      %p41 = por %p39, %p40
      %p42 = scmp.ne.s32.totalorder %s28, %s29
      %p43 = scmp.eq.s32.totalorder %s21, 1
      %p44 = por %p42, %p43
      %p46 = scmp.ne.s32.totalorder %s29, %s45
      %p47 = scmp.eq.s32.totalorder %s21, 0
      %p48 = por %p46, %p47
      %s50 = sadd.s32 %s49, 1
      %p53 = scmp.eq.s32.totalorder %s15, 1
      %p54 = scmp.ne.s32.totalorder %s49, %s51
      %p55 = scmp.eq.s32.totalorder %s15, 0
      %p56 = por %p54, %p55
      %p57 = scmp.ne.s32.totalorder %s49, %s51
      %p58 = scmp.eq.s32.totalorder %s20, 1
      %p59 = por %p57, %p58
      %p60 = scmp.ne.s32.totalorder %s51, %s52
      %p61 = scmp.eq.s32.totalorder %s20, 0
      %p62 = por %p60, %p61
      %p63 = scmp.ne.s32.totalorder %s51, %s52
      %p64 = scmp.eq.s32.totalorder %s21, 1
      %p65 = por %p63, %p64
      %p67 = scmp.ne.s32.totalorder %s52, %s66
      %p68 = scmp.eq.s32.totalorder %s21, 0
      %p69 = por %p67, %p68
      %s71 = sadd.s32 %s70, 1
      %p74 = scmp.eq.s32.totalorder %s15, 1
      %p75 = scmp.ne.s32.totalorder %s70, %s72
      %p76 = scmp.eq.s32.totalorder %s15, 0
      %p77 = por %p75, %p76
      %p78 = scmp.ne.s32.totalorder %s70, %s72
      %p79 = scmp.eq.s32.totalorder %s20, 1
      %p80 = por %p78, %p79
      %p81 = scmp.ne.s32.totalorder %s72, %s73
      %p82 = scmp.eq.s32.totalorder %s20, 0
      %p83 = por %p81, %p82
      %p84 = scmp.ne.s32.totalorder %s72, %s73
      %p85 = scmp.eq.s32.totalorder %s21, 1
      %p86 = por %p84, %p85
      %p88 = scmp.ne.s32.totalorder %s73, %s87
      %p89 = scmp.eq.s32.totalorder %s21, 0
      %p90 = por %p88, %p89
      %s92 = sadd.s32 %s91, 1
      %p95 = scmp.eq.s32.totalorder %s15, 1
      %p96 = scmp.ne.s32.totalorder %s91, %s93
      %p97 = scmp.eq.s32.totalorder %s15, 0
      %p98 = por %p96, %p97
      %p99 = scmp.ne.s32.totalorder %s91, %s93
      %p100 = scmp.eq.s32.totalorder %s20, 1
      %p101 = por %p99, %p100
      %p102 = scmp.ne.s32.totalorder %s93, %s94
      %p103 = scmp.eq.s32.totalorder %s20, 0
      %p104 = por %p102, %p103
      %p105 = scmp.ne.s32.totalorder %s93, %s94
      %p106 = scmp.eq.s32.totalorder %s21, 1
      %p107 = por %p105, %p106
      %p109 = scmp.ne.s32.totalorder %s94, %s108
      %p110 = scmp.eq.s32.totalorder %s21, 0
      %p111 = por %p109, %p110
      %s113 = sadd.s32 %s112, 1
      %p116 = scmp.eq.s32.totalorder %s15, 1
      %p117 = scmp.ne.s32.totalorder %s112, %s114
      %p118 = scmp.eq.s32.totalorder %s15, 0
      %p119 = por %p117, %p118
      %p120 = scmp.ne.s32.totalorder %s112, %s114
      %p121 = scmp.eq.s32.totalorder %s20, 1
      %p122 = por %p120, %p121
      %p123 = scmp.ne.s32.totalorder %s114, %s115
      %p124 = scmp.eq.s32.totalorder %s20, 0
      %p125 = por %p123, %p124
      %p126 = scmp.ne.s32.totalorder %s114, %s115
      %p127 = scmp.eq.s32.totalorder %s21, 1
      %p128 = por %p126, %p127
      %p130 = scmp.ne.s32.totalorder %s115, %s129
      %p131 = scmp.eq.s32.totalorder %s21, 0
      %p132 = por %p130, %p131
      %s134 = sadd.s32 %s133, 1
      %p137 = scmp.eq.s32.totalorder %s15, 1
      %p138 = scmp.ne.s32.totalorder %s133, %s135
      %p139 = scmp.eq.s32.totalorder %s15, 0
      %p140 = por %p138, %p139
      %p141 = scmp.ne.s32.totalorder %s133, %s135
      %p142 = scmp.eq.s32.totalorder %s20, 1
      %p143 = por %p141, %p142
      %p144 = scmp.ne.s32.totalorder %s135, %s136
      %p145 = scmp.eq.s32.totalorder %s20, 0
      %p146 = por %p144, %p145
      %p147 = scmp.ne.s32.totalorder %s135, %s136
      %p148 = scmp.eq.s32.totalorder %s21, 1
      %p149 = por %p147, %p148
      %p151 = scmp.ne.s32.totalorder %s136, %s150
      %p152 = scmp.eq.s32.totalorder %s21, 0
      %p153 = por %p151, %p152
      %s155 = sadd.s32 %s154, 1
      %p158 = scmp.eq.s32.totalorder %s15, 1
      %p159 = scmp.ne.s32.totalorder %s154, %s156
      %p160 = scmp.eq.s32.totalorder %s15, 0
      %p161 = por %p159, %p160
      %p162 = scmp.ne.s32.totalorder %s154, %s156
      %p163 = scmp.eq.s32.totalorder %s20, 1
      %p164 = por %p162, %p163
      %p165 = scmp.ne.s32.totalorder %s156, %s157
      %p166 = scmp.eq.s32.totalorder %s20, 0
      %p167 = por %p165, %p166
      %p168 = scmp.ne.s32.totalorder %s156, %s157
      %p169 = scmp.eq.s32.totalorder %s21, 1
      %p170 = por %p168, %p169
      %p172 = scmp.ne.s32.totalorder %s157, %s171
      %p173 = scmp.eq.s32.totalorder %s21, 0
      %p174 = por %p172, %p173
      %s176 = sadd.s32 %s175, 1
      %p179 = scmp.eq.s32.totalorder %s15, 1
      %p180 = scmp.ne.s32.totalorder %s175, %s177
      %p181 = scmp.eq.s32.totalorder %s15, 0
      %p182 = por %p180, %p181
      %p183 = scmp.ne.s32.totalorder %s175, %s177
      %p184 = scmp.eq.s32.totalorder %s20, 1
      %p185 = por %p183, %p184
      %p186 = scmp.ne.s32.totalorder %s177, %s178
      %p187 = scmp.eq.s32.totalorder %s20, 0
      %p188 = por %p186, %p187
      %p189 = scmp.ne.s32.totalorder %s177, %s178
      %p190 = scmp.eq.s32.totalorder %s21, 1
      %p191 = por %p189, %p190
      %p193 = scmp.ne.s32.totalorder %s178, %s192
      %p194 = scmp.eq.s32.totalorder %s21, 0
      %p195 = por %p193, %p194
      %s196 = ssub.s32 %s15, %s22
      %p197 = scmp.eq.s32.totalorder %s196, 0
      %s199 = sadd.s32 %s198, 1
      %s200 = scalar_select %p197, %s198, %s199
      %p203 = pneg %p197
      %p204 = scmp.eq.s32.totalorder %s15, 1
      %p205 = por %p203, %p204
      %p206 = scmp.ne.s32.totalorder %s198, %s201
      %p207 = scmp.eq.s32.totalorder %s15, 0
      %p208 = por %p206, %p207
      %p209 = scmp.ne.s32.totalorder %s198, %s201
      %p210 = scmp.eq.s32.totalorder %s20, 1
      %p211 = por %p209, %p210
      %p212 = scmp.ne.s32.totalorder %s201, %s202
      %p213 = scmp.eq.s32.totalorder %s20, 0
      %p214 = por %p212, %p213
      %p215 = scmp.ne.s32.totalorder %s201, %s202
      %p216 = scmp.eq.s32.totalorder %s21, 1
      %p217 = por %p215, %p216
      %p219 = scmp.ne.s32.totalorder %s202, %s218
      %p220 = scmp.eq.s32.totalorder %s21, 0
      %p221 = por %p219, %p220
      %p222 = scmp.le.s32.totalorder 1, %s15
      %p223 = scmp.lt.s32.totalorder %s15, 3
      %p224 = pnand %p222, %p223
      %p225 = pneg %p224
      // Predicated region
      $region9: #{bottleneck_forward.1} parent=5 // pred_check
        _
      $region10: #{bottleneck_forward.1} parent=5 // pred_check_branch
        %227 = sbr.rel (%p224) target = $region12
      $region11: #{bottleneck_forward.1} parent=5 // pred_region
        %s228 = ssub.s32 %s15, 1
        // Predicated region
        $region13: #{bottleneck_forward.1} parent=11 // pred_check
          %p229 = pneg %p62
        $region14: #{bottleneck_forward.1} parent=11 // pred_check_branch
          %231 = sbr.rel (%p229) target = $region16
        $region15: #{bottleneck_forward.1} parent=11 // pred_region
          _
        $region16: #{bottleneck_forward.1} parent=11 // pred_fallthru
          _
        // Predicated region
        $region17: #{bottleneck_forward.1} parent=11 // pred_check
          %p232 = pneg %p83
        $region18: #{bottleneck_forward.1} parent=11 // pred_check_branch
          %234 = sbr.rel (%p232) target = $region20
        $region19: #{bottleneck_forward.1} parent=11 // pred_region
          _
        $region20: #{bottleneck_forward.1} parent=11 // pred_fallthru
          _
        // Predicated region
        $region21: #{bottleneck_forward.1} parent=11 // pred_check
          %p235 = pneg %p104
        $region22: #{bottleneck_forward.1} parent=11 // pred_check_branch
          %237 = sbr.rel (%p235) target = $region24
        $region23: #{bottleneck_forward.1} parent=11 // pred_region
          _
        $region24: #{bottleneck_forward.1} parent=11 // pred_fallthru
          _
        // Predicated region
        $region25: #{bottleneck_forward.1} parent=11 // pred_check
          %p238 = pneg %p125
        $region26: #{bottleneck_forward.1} parent=11 // pred_check_branch
          %240 = sbr.rel (%p238) target = $region28
        $region27: #{bottleneck_forward.1} parent=11 // pred_region
          %s242 = ssub.s32 12800, 12800
          %243 = vsyncadd [#allocation4], %s242
          %s244 = sshll.u32 [#allocation3], 4
          %s245 = int_to_ptr.vmem [resolvable:$true] %s244
          %250 = dma.hbm_to_vmem [thread:$0]  %s4, 12800, %s245, [#allocation4], 256, 256, 16
        $region28: #{bottleneck_forward.1} parent=11 // pred_fallthru
          _
        // Predicated region
        $region29: #{bottleneck_forward.1} parent=11 // pred_check
          %p251 = pneg %p146
        $region30: #{bottleneck_forward.1} parent=11 // pred_check_branch
          %253 = sbr.rel (%p251) target = $region32
        $region31: #{bottleneck_forward.1} parent=11 // pred_region
          _
        $region32: #{bottleneck_forward.1} parent=11 // pred_fallthru
          _
        // Predicated region
        $region33: #{bottleneck_forward.1} parent=11 // pred_check
          %p254 = pneg %p167
        $region34: #{bottleneck_forward.1} parent=11 // pred_check_branch
          %256 = sbr.rel (%p254) target = $region36
        $region35: #{bottleneck_forward.1} parent=11 // pred_region
          _
        $region36: #{bottleneck_forward.1} parent=11 // pred_fallthru
          _
        // Predicated region
        $region37: #{bottleneck_forward.1} parent=11 // pred_check
          %p257 = pneg %p188
        $region38: #{bottleneck_forward.1} parent=11 // pred_check_branch
          %259 = sbr.rel (%p257) target = $region40
        $region39: #{bottleneck_forward.1} parent=11 // pred_region
          _
        $region40: #{bottleneck_forward.1} parent=11 // pred_fallthru
          _
      $region12: #{bottleneck_forward.1} parent=5 // pred_fallthru
        _
      %p260 = scmp.lt.s32.totalorder %s15, 2
      // Predicated region
      $region41: #{bottleneck_forward.1} parent=5 // pred_check
        %p261 = pneg %p260
      $region42: #{bottleneck_forward.1} parent=5 // pred_check_branch
        %263 = sbr.rel (%p261) target = $region44
      $region43: #{bottleneck_forward.1} parent=5 // pred_region
        // Predicated region
        $region45: #{bottleneck_forward.1} parent=43 // pred_check
          %p264 = pneg %p35
        $region46: #{bottleneck_forward.1} parent=43 // pred_check_branch
          %266 = sbr.rel (%p264) target = $region48
        $region47: #{bottleneck_forward.1} parent=43 // pred_region
          %p267 = scmp.lt.s32.totalorder %s15, 1
          %s268 = scalar_select %p267, %s15, 1
          %s269 = smul.addr %s268, 4
          %s270 = smul.addr %s269, 8
          %s271 = scalar_lea.vmem %s0, %s270
        $region48: #{bottleneck_forward.1} parent=43 // pred_fallthru
          _
      $region44: #{bottleneck_forward.1} parent=5 // pred_fallthru
        _
      %p272 = scmp.le.s32.totalorder 1, %s15
      %p273 = scmp.lt.s32.totalorder %s15, 3
      %p274 = pnand %p272, %p273
      %p275 = pneg %p274
      // Predicated region
      $region49: #{bottleneck_forward.1} parent=5 // pred_check
        _
      $region50: #{bottleneck_forward.1} parent=5 // pred_check_branch
        %277 = sbr.rel (%p274) target = $region52
      $region51: #{bottleneck_forward.1} parent=5 // pred_region
        %s278 = ssub.s32 %s15, 1
        // Predicated region
        $region53: #{bottleneck_forward.1} parent=51 // pred_check
          %p279 = pneg %p125
        $region54: #{bottleneck_forward.1} parent=51 // pred_check_branch
          %281 = sbr.rel (%p279) target = $region56
        $region55: #{bottleneck_forward.1} parent=51 // pred_region
          %282 = dma.done [#allocation4], 12800
        $region56: #{bottleneck_forward.1} parent=51 // pred_fallthru
          _
        %p283 = scmp.lt.s32.totalorder %s20, 1
        %s284 = scalar_select %p283, %s20, 1
        %s285 = smul.addr %s284, 4
        %s286 = smul.addr %s285, 8
        %s287 = scalar_lea.vmem %s0, %s286
        %p288 = pneg %p41
        %p289 = pneg %p38
        %p290 = pneg %p62
        %p291 = pneg %p59
        %p292 = pneg %p83
        %p293 = pneg %p80
        %p294 = pneg %p104
        %p295 = pneg %p101
        %p296 = pneg %p125
        %p297 = pneg %p122
        %p298 = pneg %p146
        %p299 = pneg %p143
        %p300 = pneg %p167
        %p301 = pneg %p164
        %p302 = pneg %p188
        %p303 = pneg %p185
        %p304 = pneg %p214
        %p305 = pneg %p211
        %p306 = scmp.lt.s32.totalorder %s20, 1
        %s307 = scalar_select %p306, %s20, 1
        %s308 = smul.addr %s307, 8
        %s309 = smul.addr %s308, 8
        %s310 = scalar_lea.vmem %s8, %s309
        %p311 = scmp.lt.s32.totalorder %s20, 1
        %s312 = scalar_select %p311, %s20, 1
        %s313 = smul.addr %s312, 4
        %s314 = smul.addr %s313, 8
        %s315 = scalar_lea.vmem %s0, %s314
        %p316 = scmp.lt.s32.totalorder %s20, 1
        %s317 = scalar_select %p316, %s20, 1
        %s318 = smul.addr %s317, 8
        %s319 = smul.addr %s318, 8
        %s320 = scalar_lea.vmem %s8, %s319
        %v322 = vld [vmem:[%s315] sm:$0xff]
        %v323 = vld [vmem:[%s315 + $0x8] sm:$0xff]
        %v324 = vld [vmem:[%s315 + $0x10] sm:$0xff]
        %v325 = vld [vmem:[%s315 + $0x18] sm:$0xff]
        %v326 = vld [vmem:[%s1] sm:$0xff]
        %v327 = vld [vmem:[%s5] sm:$0xff]
        %329 = vset.pattern.permute.xlu0 0
        %330 = vperm.xlu0 %329, %v327
        %v331 = vpop.permute.xlu0 %330
        %vm333 = vcmask 130048
        %v335 = vsel %vm333, %v326, 0
        %337 = vmatprep.subr.mxu0 0.0
        %338 = vmatpush1.msra.mxu0 0.0
        %339 = vmatprep.subr.mxu0 0.0
        %340 = vmatpush1.msra.mxu0 0.0
        %341 = vmatprep.subr.mxu0 0.0
        %342 = vmatpush1.msra.mxu0 0.0
        %343 = vmatprep.subr.mxu0 0.0
        %344 = vmatpush1.msra.mxu0 0.0
        %345 = vmatprep.subr.mxu0 0.0
        %346 = vmatpush1.msra.mxu0 0.0
        %347 = vmatprep.subr.mxu0 0.0
        %348 = vmatpush1.msra.mxu0 0.0
        %349 = vmatprep.subr.mxu0 0.0
        %350 = vmatpush1.msra.mxu0 0.0
        %351 = vmatprep.subr.mxu0 0.0
        %352 = vmatpush1.msra.mxu0 0.0
        %353 = vmatprep.subr.mxu0 0.0
        %354 = vmatpush1.msra.mxu0 0.0
        %355 = vmatprep.subr.mxu0 0.0
        %356 = vmatpush1.msra.mxu0 0.0
        %357 = vmatprep.subr.mxu0 0.0
        %358 = vmatpush1.msra.mxu0 0.0
        %359 = vmatprep.subr.mxu0 0.0
        %360 = vmatpush1.msra.mxu0 0.0
        %361 = vmatprep.subr.mxu0 0.0
        %362 = vmatpush1.msra.mxu0 0.0
        %363 = vmatprep.subr.mxu0 0.0
        %364 = vmatpush1.msra.mxu0 0.0
        %365 = vmatprep.subr.mxu0 %v325
        %366 = vmatpush1.msra.mxu0 %v324
        %367 = vmatprep.subr.mxu0 %v323
        %368 = vmatpush1.msra.mxu0 %v322
        %369 = vmatprep.subr.mxu0 0.0
        %370 = vmatpush2.msra.mxu0 0.0
        %371 = vmatprep.subr.mxu0 0.0
        %372 = vmatpush2.msra.mxu0 0.0
        %373 = vmatprep.subr.mxu0 0.0
        %374 = vmatpush2.msra.mxu0 0.0
        %375 = vmatprep.subr.mxu0 0.0
        %376 = vmatpush2.msra.mxu0 0.0
        %377 = vmatprep.subr.mxu0 0.0
        %378 = vmatpush2.msra.mxu0 0.0
        %379 = vmatprep.subr.mxu0 0.0
        %380 = vmatpush2.msra.mxu0 0.0
        %381 = vmatprep.subr.mxu0 0.0
        %382 = vmatpush2.msra.mxu0 0.0
        %383 = vmatprep.subr.mxu0 0.0
        %384 = vmatpush2.msra.mxu0 0.0
        %385 = vmatprep.subr.mxu0 0.0
        %386 = vmatpush2.msra.mxu0 0.0
        %387 = vmatprep.subr.mxu0 0.0
        %388 = vmatpush2.msra.mxu0 0.0
        %389 = vmatprep.subr.mxu0 0.0
        %390 = vmatpush2.msra.mxu0 0.0
        %391 = vmatprep.subr.mxu0 0.0
        %392 = vmatpush2.msra.mxu0 0.0
        %393 = vmatprep.subr.mxu0 0.0
        %394 = vmatpush2.msra.mxu0 0.0
        %395 = vmatprep.subr.mxu0 0.0
        %396 = vmatpush2.msra.mxu0 0.0
        %397 = vmatprep.subr.mxu0 0.0
        %398 = vmatpush2.msra.mxu0 0.0
        %399 = vmatprep.subr.mxu0 0.0
        %400 = vmatpush2.msra.mxu0 0.0
        %401 = vmatprep.mubr.f32.mxu0 0.0
        %402 = vmatmul.mubr.f32.gmra.mxu0 %v335
        %v403 = vpop.f32.mrf.mxu0
        %v404 = vadd.f32 %v331, %v403
        %v405 = vpop.f32.mrf.mxu0
        %v406 = vadd.f32 %v331, %v405
        %407 = vdwg.mxu0
        %v408 = vmax.f32 %v404, 0.0
        %v409 = vmax.f32 %v406, 0.0
        %410 = vrot.lane.b32.xlu0 %v408, 51
        %v411 = vpop.permute.xlu0 %410
        %412 = vrot.lane.b32.xlu0 %v409, 51
        %v413 = vpop.permute.xlu0 %412
        %v414 = vlaneseq
        %v415 = vand.u32 %v414, 127
        %vm416 = vcmp.lt.s32.totalorder %v415, 51
        %v417 = vsel %vm416, %v411, %v413
        %v418 = vsel %vm416, %v413, %v411
        %419 = vrot.lane.b32.xlu0 %v408, 50
        %v420 = vpop.permute.xlu0 %419
        %421 = vrot.lane.b32.xlu0 %v409, 50
        %v422 = vpop.permute.xlu0 %421
        %vm423 = vcmp.lt.s32.totalorder %v415, 50
        %v424 = vsel %vm423, %v420, %v422
        %v425 = vsel %vm423, %v422, %v420
        %v426 = vld [vmem:[#allocation3] sm:$0xff]
        %v427 = vld [vmem:[#allocation3 + $0x8] sm:$0xff]
        %v428 = vld [vmem:[#allocation3 + $0x10] sm:$0xff]
        %v429 = vld [vmem:[#allocation3 + $0x18] sm:$0xff]
        %v430 = vmul.f32 %v418, %v426
        %v431 = vmul.f32 %v417, %v427
        %v432 = vmul.f32 %v425, %v428
        %v433 = vmul.f32 %v424, %v429
        %v434 = vpack.c.bf16 %v432, %v430
        %v435 = vpack.c.bf16 %v433, %v431
        %v438 = vunpack.c.l.b16 %v434
        %v439 = vunpack.c.l.b16 %v435
        %v440 = vunpack.c.h.b16 %v434
        %v441 = vunpack.c.h.b16 %v435
        %v442 = vpack.c.b16 %v439, %v438
        %v443 = vpack.c.b16 %v441, %v440
        %446 = vst [vmem:[#allocation2] sm:$0xff] %v442
        %447 = vst [vmem:[#allocation2 + $0x8] sm:$0xff] %v443
        %448 = vrot.lane.b32.xlu0 %v408, 49
        %v449 = vpop.permute.xlu0 %448
        %450 = vrot.lane.b32.xlu0 %v409, 49
        %v451 = vpop.permute.xlu0 %450
        %vm452 = vcmp.lt.s32.totalorder %v415, 49
        %v453 = vsel %vm452, %v449, %v451
        %v454 = vsel %vm452, %v451, %v449
        %455 = vrot.lane.b32.xlu0 %v408, 48
        %v456 = vpop.permute.xlu0 %455
        %457 = vrot.lane.b32.xlu0 %v409, 48
        %v458 = vpop.permute.xlu0 %457
        %vm459 = vcmp.lt.s32.totalorder %v415, 48
        %v460 = vsel %vm459, %v456, %v458
        %v461 = vsel %vm459, %v458, %v456
        %v462 = vld [vmem:[#allocation3 + $0x20] sm:$0xff]
        %v463 = vld [vmem:[#allocation3 + $0x28] sm:$0xff]
        %v464 = vld [vmem:[#allocation3 + $0x30] sm:$0xff]
        %v465 = vld [vmem:[#allocation3 + $0x38] sm:$0xff]
        %v466 = vmul.f32 %v454, %v462
        %v467 = vmul.f32 %v453, %v463
        %v468 = vmul.f32 %v461, %v464
        %v469 = vmul.f32 %v460, %v465
        %v470 = vpack.c.bf16 %v468, %v466
        %v471 = vpack.c.bf16 %v469, %v467
        %v474 = vunpack.c.l.b16 %v470
        %v475 = vunpack.c.l.b16 %v471
        %v476 = vunpack.c.h.b16 %v470
        %v477 = vunpack.c.h.b16 %v471
        %v478 = vpack.c.b16 %v475, %v474
        %v479 = vpack.c.b16 %v477, %v476
        %482 = vst [vmem:[#allocation2 + $0x10] sm:$0xff] %v478
        %483 = vst [vmem:[#allocation2 + $0x18] sm:$0xff] %v479
        %484 = vrot.lane.b32.xlu0 %v408, 47
        %v485 = vpop.permute.xlu0 %484
        %486 = vrot.lane.b32.xlu0 %v409, 47
        %v487 = vpop.permute.xlu0 %486
        %vm488 = vcmp.lt.s32.totalorder %v415, 47
        %v489 = vsel %vm488, %v485, %v487
        %v490 = vsel %vm488, %v487, %v485
        %491 = vrot.lane.b32.xlu0 %v408, 46
        %v492 = vpop.permute.xlu0 %491
        %493 = vrot.lane.b32.xlu0 %v409, 46
        %v494 = vpop.permute.xlu0 %493
        %vm495 = vcmp.lt.s32.totalorder %v415, 46
        %v496 = vsel %vm495, %v492, %v494
        %v497 = vsel %vm495, %v494, %v492
        %v498 = vld [vmem:[#allocation3 + $0x40] sm:$0xff]
        %v499 = vld [vmem:[#allocation3 + $0x48] sm:$0xff]
        %v500 = vld [vmem:[#allocation3 + $0x50] sm:$0xff]
        %v501 = vld [vmem:[#allocation3 + $0x58] sm:$0xff]
        %v502 = vmul.f32 %v490, %v498
        %v503 = vmul.f32 %v489, %v499
        %v504 = vmul.f32 %v497, %v500
        %v505 = vmul.f32 %v496, %v501
        %v506 = vpack.c.bf16 %v504, %v502
        %v507 = vpack.c.bf16 %v505, %v503
        %v510 = vunpack.c.l.b16 %v506
        %v511 = vunpack.c.l.b16 %v507
        %v512 = vunpack.c.h.b16 %v506
        %v513 = vunpack.c.h.b16 %v507
        %v514 = vpack.c.b16 %v511, %v510
        %v515 = vpack.c.b16 %v513, %v512
        %518 = vst [vmem:[#allocation2 + $0x20] sm:$0xff] %v514
        %519 = vst [vmem:[#allocation2 + $0x28] sm:$0xff] %v515
        %520 = vrot.lane.b32.xlu0 %v408, 45
        %v521 = vpop.permute.xlu0 %520
        %522 = vrot.lane.b32.xlu0 %v409, 45
        %v523 = vpop.permute.xlu0 %522
        %vm524 = vcmp.lt.s32.totalorder %v415, 45
        %v525 = vsel %vm524, %v521, %v523
        %v526 = vsel %vm524, %v523, %v521
        %527 = vrot.lane.b32.xlu0 %v408, 35
        %v528 = vpop.permute.xlu0 %527
        %529 = vrot.lane.b32.xlu0 %v409, 35
        %v530 = vpop.permute.xlu0 %529
        %vm531 = vcmp.lt.s32.totalorder %v415, 35
        %v532 = vsel %vm531, %v528, %v530
        %v533 = vsel %vm531, %v530, %v528
        %v534 = vld [vmem:[#allocation3 + $0x60] sm:$0xff]
        %v535 = vld [vmem:[#allocation3 + $0x68] sm:$0xff]
        %v536 = vld [vmem:[#allocation3 + $0x70] sm:$0xff]
        %v537 = vld [vmem:[#allocation3 + $0x78] sm:$0xff]
        %v538 = vmul.f32 %v526, %v534
        %v539 = vmul.f32 %v525, %v535
        %v540 = vmul.f32 %v533, %v536
        %v541 = vmul.f32 %v532, %v537
        %v542 = vpack.c.bf16 %v540, %v538
        %v543 = vpack.c.bf16 %v541, %v539
        %v546 = vunpack.c.l.b16 %v542
        %v547 = vunpack.c.l.b16 %v543
        %v548 = vunpack.c.h.b16 %v542
        %v549 = vunpack.c.h.b16 %v543
        %v550 = vpack.c.b16 %v547, %v546
        %v551 = vpack.c.b16 %v549, %v548
        %554 = vst [vmem:[#allocation2 + $0x30] sm:$0xff] %v550
        %555 = vst [vmem:[#allocation2 + $0x38] sm:$0xff] %v551
        %556 = vrot.lane.b32.xlu0 %v408, 34
        %v557 = vpop.permute.xlu0 %556
        %558 = vrot.lane.b32.xlu0 %v409, 34
        %v559 = vpop.permute.xlu0 %558
        %vm560 = vcmp.lt.s32.totalorder %v415, 34
        %v561 = vsel %vm560, %v557, %v559
        %v562 = vsel %vm560, %v559, %v557
        %563 = vrot.lane.b32.xlu0 %v408, 33
        %v564 = vpop.permute.xlu0 %563
        %565 = vrot.lane.b32.xlu0 %v409, 33
        %v566 = vpop.permute.xlu0 %565
        %vm567 = vcmp.lt.s32.totalorder %v415, 33
        %v568 = vsel %vm567, %v564, %v566
        %v569 = vsel %vm567, %v566, %v564
        %v570 = vld [vmem:[#allocation3 + $0x80] sm:$0xff]
        %v571 = vld [vmem:[#allocation3 + $0x88] sm:$0xff]
        %v572 = vld [vmem:[#allocation3 + $0x90] sm:$0xff]
        %v573 = vld [vmem:[#allocation3 + $0x98] sm:$0xff]
        %v574 = vmul.f32 %v562, %v570
        %v575 = vmul.f32 %v561, %v571
        %v576 = vmul.f32 %v569, %v572
        %v577 = vmul.f32 %v568, %v573
        %v578 = vpack.c.bf16 %v576, %v574
        %v579 = vpack.c.bf16 %v577, %v575
        %v582 = vunpack.c.l.b16 %v578
        %v583 = vunpack.c.l.b16 %v579
        %v584 = vunpack.c.h.b16 %v578
        %v585 = vunpack.c.h.b16 %v579
        %v586 = vpack.c.b16 %v583, %v582
        %v587 = vpack.c.b16 %v585, %v584
        %590 = vst [vmem:[#allocation2 + $0x40] sm:$0xff] %v586
        %591 = vst [vmem:[#allocation2 + $0x48] sm:$0xff] %v587
        %592 = vrot.lane.b32.xlu0 %v408, 32
        %v593 = vpop.permute.xlu0 %592
        %594 = vrot.lane.b32.xlu0 %v409, 32
        %v595 = vpop.permute.xlu0 %594
        %vm596 = vcmp.lt.s32.totalorder %v415, 32
        %v597 = vsel %vm596, %v593, %v595
        %v598 = vsel %vm596, %v595, %v593
        %599 = vrot.lane.b32.xlu0 %v408, 31
        %v600 = vpop.permute.xlu0 %599
        %601 = vrot.lane.b32.xlu0 %v409, 31
        %v602 = vpop.permute.xlu0 %601
        %vm603 = vcmp.lt.s32.totalorder %v415, 31
        %v604 = vsel %vm603, %v600, %v602
        %v605 = vsel %vm603, %v602, %v600
        %v606 = vld [vmem:[#allocation3 + $0xa0] sm:$0xff]
        %v607 = vld [vmem:[#allocation3 + $0xa8] sm:$0xff]
        %v608 = vld [vmem:[#allocation3 + $0xb0] sm:$0xff]
        %v609 = vld [vmem:[#allocation3 + $0xb8] sm:$0xff]
        %v610 = vmul.f32 %v598, %v606
        %v611 = vmul.f32 %v597, %v607
        %v612 = vmul.f32 %v605, %v608
        %v613 = vmul.f32 %v604, %v609
        %v614 = vpack.c.bf16 %v612, %v610
        %v615 = vpack.c.bf16 %v613, %v611
        %v618 = vunpack.c.l.b16 %v614
        %v619 = vunpack.c.l.b16 %v615
        %v620 = vunpack.c.h.b16 %v614
        %v621 = vunpack.c.h.b16 %v615
        %v622 = vpack.c.b16 %v619, %v618
        %v623 = vpack.c.b16 %v621, %v620
        %626 = vst [vmem:[#allocation2 + $0x50] sm:$0xff] %v622
        %627 = vst [vmem:[#allocation2 + $0x58] sm:$0xff] %v623
        %628 = vrot.lane.b32.xlu0 %v408, 30
        %v629 = vpop.permute.xlu0 %628
        %630 = vrot.lane.b32.xlu0 %v409, 30
        %v631 = vpop.permute.xlu0 %630
        %vm632 = vcmp.lt.s32.totalorder %v415, 30
        %v633 = vsel %vm632, %v629, %v631
        %v634 = vsel %vm632, %v631, %v629
        %635 = vrot.lane.b32.xlu0 %v408, 29
        %v636 = vpop.permute.xlu0 %635
        %637 = vrot.lane.b32.xlu0 %v409, 29
        %v638 = vpop.permute.xlu0 %637
        %vm639 = vcmp.lt.s32.totalorder %v415, 29
        %v640 = vsel %vm639, %v636, %v638
        %v641 = vsel %vm639, %v638, %v636
        %v642 = vld [vmem:[#allocation3 + $0xc0] sm:$0xff]
        %v643 = vld [vmem:[#allocation3 + $0xc8] sm:$0xff]
        %v644 = vld [vmem:[#allocation3 + $0xd0] sm:$0xff]
        %v645 = vld [vmem:[#allocation3 + $0xd8] sm:$0xff]
        %v646 = vmul.f32 %v634, %v642
        %v647 = vmul.f32 %v633, %v643
        %v648 = vmul.f32 %v641, %v644
        %v649 = vmul.f32 %v640, %v645
        %v650 = vpack.c.bf16 %v648, %v646
        %v651 = vpack.c.bf16 %v649, %v647
        %v654 = vunpack.c.l.b16 %v650
        %v655 = vunpack.c.l.b16 %v651
        %v656 = vunpack.c.h.b16 %v650
        %v657 = vunpack.c.h.b16 %v651
        %v658 = vpack.c.b16 %v655, %v654
        %v659 = vpack.c.b16 %v657, %v656
        %662 = vst [vmem:[#allocation2 + $0x60] sm:$0xff] %v658
        %663 = vst [vmem:[#allocation2 + $0x68] sm:$0xff] %v659
        %664 = vrot.lane.b32.xlu0 %v408, 19
        %v665 = vpop.permute.xlu0 %664
        %666 = vrot.lane.b32.xlu0 %v409, 19
        %v667 = vpop.permute.xlu0 %666
        %vm668 = vcmp.lt.s32.totalorder %v415, 19
        %v669 = vsel %vm668, %v665, %v667
        %v670 = vsel %vm668, %v667, %v665
        %671 = vrot.lane.b32.xlu0 %v408, 18
        %v672 = vpop.permute.xlu0 %671
        %673 = vrot.lane.b32.xlu0 %v409, 18
        %v674 = vpop.permute.xlu0 %673
        %vm675 = vcmp.lt.s32.totalorder %v415, 18
        %v676 = vsel %vm675, %v672, %v674
        %v677 = vsel %vm675, %v674, %v672
        %v678 = vld [vmem:[#allocation3 + $0xe0] sm:$0xff]
        %v679 = vld [vmem:[#allocation3 + $0xe8] sm:$0xff]
        %v680 = vld [vmem:[#allocation3 + $0xf0] sm:$0xff]
        %v681 = vld [vmem:[#allocation3 + $0xf8] sm:$0xff]
        %v682 = vmul.f32 %v670, %v678
        %v683 = vmul.f32 %v669, %v679
        %v684 = vmul.f32 %v677, %v680
        %v685 = vmul.f32 %v676, %v681
        %v686 = vpack.c.bf16 %v684, %v682
        %v687 = vpack.c.bf16 %v685, %v683
        %v690 = vunpack.c.l.b16 %v686
        %v691 = vunpack.c.l.b16 %v687
        %v692 = vunpack.c.h.b16 %v686
        %v693 = vunpack.c.h.b16 %v687
        %v694 = vpack.c.b16 %v691, %v690
        %v695 = vpack.c.b16 %v693, %v692
        %698 = vst [vmem:[#allocation2 + $0x70] sm:$0xff] %v694
        %699 = vst [vmem:[#allocation2 + $0x78] sm:$0xff] %v695
        %700 = vrot.lane.b32.xlu0 %v408, 17
        %v701 = vpop.permute.xlu0 %700
        %702 = vrot.lane.b32.xlu0 %v409, 17
        %v703 = vpop.permute.xlu0 %702
        %vm704 = vcmp.lt.s32.totalorder %v415, 17
        %v705 = vsel %vm704, %v701, %v703
        %v706 = vsel %vm704, %v703, %v701
        %707 = vrot.lane.b32.xlu0 %v408, 16
        %v708 = vpop.permute.xlu0 %707
        %709 = vrot.lane.b32.xlu0 %v409, 16
        %v710 = vpop.permute.xlu0 %709
        %vm711 = vcmp.lt.s32.totalorder %v415, 16
        %v712 = vsel %vm711, %v708, %v710
        %v713 = vsel %vm711, %v710, %v708
        %v714 = vld [vmem:[#allocation3 + $0x100] sm:$0xff]
        %v715 = vld [vmem:[#allocation3 + $0x108] sm:$0xff]
        %v716 = vld [vmem:[#allocation3 + $0x110] sm:$0xff]
        %v717 = vld [vmem:[#allocation3 + $0x118] sm:$0xff]
        %v718 = vmul.f32 %v706, %v714
        %v719 = vmul.f32 %v705, %v715
        %v720 = vmul.f32 %v713, %v716
        %v721 = vmul.f32 %v712, %v717
        %v722 = vpack.c.bf16 %v720, %v718
        %v723 = vpack.c.bf16 %v721, %v719
        %v726 = vunpack.c.l.b16 %v722
        %v727 = vunpack.c.l.b16 %v723
        %v728 = vunpack.c.h.b16 %v722
        %v729 = vunpack.c.h.b16 %v723
        %v730 = vpack.c.b16 %v727, %v726
        %v731 = vpack.c.b16 %v729, %v728
        %734 = vst [vmem:[#allocation2 + $0x80] sm:$0xff] %v730
        %735 = vst [vmem:[#allocation2 + $0x88] sm:$0xff] %v731
        %736 = vrot.lane.b32.xlu0 %v408, 15
        %v737 = vpop.permute.xlu0 %736
        %738 = vrot.lane.b32.xlu0 %v409, 15
        %v739 = vpop.permute.xlu0 %738
        %vm740 = vcmp.lt.s32.totalorder %v415, 15
        %v741 = vsel %vm740, %v737, %v739
        %v742 = vsel %vm740, %v739, %v737
        %743 = vrot.lane.b32.xlu0 %v408, 14
        %v744 = vpop.permute.xlu0 %743
        %745 = vrot.lane.b32.xlu0 %v409, 14
        %v746 = vpop.permute.xlu0 %745
        %vm747 = vcmp.lt.s32.totalorder %v415, 14
        %v748 = vsel %vm747, %v744, %v746
        %v749 = vsel %vm747, %v746, %v744
        %v750 = vld [vmem:[#allocation3 + $0x120] sm:$0xff]
        %v751 = vld [vmem:[#allocation3 + $0x128] sm:$0xff]
        %v752 = vld [vmem:[#allocation3 + $0x130] sm:$0xff]
        %v753 = vld [vmem:[#allocation3 + $0x138] sm:$0xff]
        %v754 = vmul.f32 %v742, %v750
        %v755 = vmul.f32 %v741, %v751
        %v756 = vmul.f32 %v749, %v752
        %v757 = vmul.f32 %v748, %v753
        %v758 = vpack.c.bf16 %v756, %v754
        %v759 = vpack.c.bf16 %v757, %v755
        %v762 = vunpack.c.l.b16 %v758
        %v763 = vunpack.c.l.b16 %v759
        %v764 = vunpack.c.h.b16 %v758
        %v765 = vunpack.c.h.b16 %v759
        %v766 = vpack.c.b16 %v763, %v762
        %v767 = vpack.c.b16 %v765, %v764
        %770 = vst [vmem:[#allocation2 + $0x90] sm:$0xff] %v766
        %771 = vst [vmem:[#allocation2 + $0x98] sm:$0xff] %v767
        %772 = vrot.lane.b32.xlu0 %v408, 13
        %v773 = vpop.permute.xlu0 %772
        %774 = vrot.lane.b32.xlu0 %v409, 13
        %v775 = vpop.permute.xlu0 %774
        %vm776 = vcmp.lt.s32.totalorder %v415, 13
        %v777 = vsel %vm776, %v773, %v775
        %v778 = vsel %vm776, %v775, %v773
        %779 = vrot.lane.b32.xlu0 %v408, 3
        %v780 = vpop.permute.xlu0 %779
        %781 = vrot.lane.b32.xlu0 %v409, 3
        %v782 = vpop.permute.xlu0 %781
        %vm783 = vcmp.lt.s32.totalorder %v415, 3
        %v784 = vsel %vm783, %v780, %v782
        %v785 = vsel %vm783, %v782, %v780
        %v786 = vld [vmem:[#allocation3 + $0x140] sm:$0xff]
        %v787 = vld [vmem:[#allocation3 + $0x148] sm:$0xff]
        %v788 = vld [vmem:[#allocation3 + $0x150] sm:$0xff]
        %v789 = vld [vmem:[#allocation3 + $0x158] sm:$0xff]
        %v790 = vmul.f32 %v778, %v786
        %v791 = vmul.f32 %v777, %v787
        %v792 = vmul.f32 %v785, %v788
        %v793 = vmul.f32 %v784, %v789
        %v794 = vpack.c.bf16 %v792, %v790
        %v795 = vpack.c.bf16 %v793, %v791
        %v798 = vunpack.c.l.b16 %v794
        %v799 = vunpack.c.l.b16 %v795
        %v800 = vunpack.c.h.b16 %v794
        %v801 = vunpack.c.h.b16 %v795
        %v802 = vpack.c.b16 %v799, %v798
        %v803 = vpack.c.b16 %v801, %v800
        %806 = vst [vmem:[#allocation2 + $0xa0] sm:$0xff] %v802
        %807 = vst [vmem:[#allocation2 + $0xa8] sm:$0xff] %v803
        %808 = vrot.lane.b32.xlu0 %v408, 2
        %v809 = vpop.permute.xlu0 %808
        %810 = vrot.lane.b32.xlu0 %v409, 2
        %v811 = vpop.permute.xlu0 %810
        %vm812 = vcmp.lt.s32.totalorder %v415, 2
        %v813 = vsel %vm812, %v809, %v811
        %v814 = vsel %vm812, %v811, %v809
        %815 = vrot.lane.b32.xlu0 %v408, 1
        %v816 = vpop.permute.xlu0 %815
        %817 = vrot.lane.b32.xlu0 %v409, 1
        %v818 = vpop.permute.xlu0 %817
        %vm819 = vcmp.lt.s32.totalorder %v415, 1
        %v820 = vsel %vm819, %v816, %v818
        %v821 = vsel %vm819, %v818, %v816
        %v822 = vld [vmem:[#allocation3 + $0x160] sm:$0xff]
        %v823 = vld [vmem:[#allocation3 + $0x168] sm:$0xff]
        %v824 = vld [vmem:[#allocation3 + $0x170] sm:$0xff]
        %v825 = vld [vmem:[#allocation3 + $0x178] sm:$0xff]
        %v826 = vmul.f32 %v814, %v822
        %v827 = vmul.f32 %v813, %v823
        %v828 = vmul.f32 %v821, %v824
        %v829 = vmul.f32 %v820, %v825
        %v830 = vpack.c.bf16 %v828, %v826
        %v831 = vpack.c.bf16 %v829, %v827
        %v834 = vunpack.c.l.b16 %v830
        %v835 = vunpack.c.l.b16 %v831
        %v836 = vunpack.c.h.b16 %v830
        %v837 = vunpack.c.h.b16 %v831
        %v838 = vpack.c.b16 %v835, %v834
        %v839 = vpack.c.b16 %v837, %v836
        %842 = vst [vmem:[#allocation2 + $0xb0] sm:$0xff] %v838
        %843 = vst [vmem:[#allocation2 + $0xb8] sm:$0xff] %v839
        %844 = vrot.lane.b32.xlu0 %v408, 127
        %v845 = vpop.permute.xlu0 %844
        %846 = vrot.lane.b32.xlu0 %v409, 127
        %v847 = vpop.permute.xlu0 %846
        %vm848 = vcmp.lt.s32.totalorder %v415, 127
        %v849 = vsel %vm848, %v845, %v847
        %v850 = vsel %vm848, %v847, %v845
        %v851 = vld [vmem:[#allocation3 + $0x180] sm:$0xff]
        %v852 = vld [vmem:[#allocation3 + $0x188] sm:$0xff]
        %v853 = vld [vmem:[#allocation3 + $0x190] sm:$0xff]
        %v854 = vld [vmem:[#allocation3 + $0x198] sm:$0xff]
        %v855 = vmul.f32 %v408, %v851
        %v856 = vmul.f32 %v409, %v852
        %v857 = vmul.f32 %v849, %v853
        %v858 = vmul.f32 %v850, %v854
        %v859 = vpack.c.bf16 %v857, %v855
        %v860 = vpack.c.bf16 %v858, %v856
        %v863 = vunpack.c.l.b16 %v859
        %v864 = vunpack.c.l.b16 %v860
        %v865 = vunpack.c.h.b16 %v859
        %v866 = vunpack.c.h.b16 %v860
        %v867 = vpack.c.b16 %v864, %v863
        %v868 = vpack.c.b16 %v866, %v865
        %871 = vst [vmem:[#allocation2 + $0xc0] sm:$0xff] %v867
        %872 = vst [vmem:[#allocation2 + $0xc8] sm:$0xff] %v868
        %873 = vrot.lane.b32.xlu0 %v408, 126
        %v874 = vpop.permute.xlu0 %873
        %875 = vrot.lane.b32.xlu0 %v409, 126
        %v876 = vpop.permute.xlu0 %875
        %vm877 = vcmp.lt.s32.totalorder %v415, 126
        %v878 = vsel %vm877, %v874, %v876
        %v879 = vsel %vm877, %v876, %v874
        %880 = vrot.lane.b32.xlu0 %v408, 125
        %v881 = vpop.permute.xlu0 %880
        %882 = vrot.lane.b32.xlu0 %v409, 125
        %v883 = vpop.permute.xlu0 %882
        %vm884 = vcmp.lt.s32.totalorder %v415, 125
        %v885 = vsel %vm884, %v881, %v883
        %v886 = vsel %vm884, %v883, %v881
        %v887 = vld [vmem:[#allocation3 + $0x1a0] sm:$0xff]
        %v888 = vld [vmem:[#allocation3 + $0x1a8] sm:$0xff]
        %v889 = vld [vmem:[#allocation3 + $0x1b0] sm:$0xff]
        %v890 = vld [vmem:[#allocation3 + $0x1b8] sm:$0xff]
        %v891 = vmul.f32 %v878, %v887
        %v892 = vmul.f32 %v879, %v888
        %v893 = vmul.f32 %v885, %v889
        %v894 = vmul.f32 %v886, %v890
        %v895 = vpack.c.bf16 %v893, %v891
        %v896 = vpack.c.bf16 %v894, %v892
        %v899 = vunpack.c.l.b16 %v895
        %v900 = vunpack.c.l.b16 %v896
        %v901 = vunpack.c.h.b16 %v895
        %v902 = vunpack.c.h.b16 %v896
        %v903 = vpack.c.b16 %v900, %v899
        %v904 = vpack.c.b16 %v902, %v901
        %907 = vst [vmem:[#allocation2 + $0xd0] sm:$0xff] %v903
        %908 = vst [vmem:[#allocation2 + $0xd8] sm:$0xff] %v904
        %909 = vrot.lane.b32.xlu0 %v408, 115
        %v910 = vpop.permute.xlu0 %909
        %911 = vrot.lane.b32.xlu0 %v409, 115
        %v912 = vpop.permute.xlu0 %911
        %vm913 = vcmp.lt.s32.totalorder %v415, 115
        %v914 = vsel %vm913, %v910, %v912
        %v915 = vsel %vm913, %v912, %v910
        %916 = vrot.lane.b32.xlu0 %v408, 114
        %v917 = vpop.permute.xlu0 %916
        %918 = vrot.lane.b32.xlu0 %v409, 114
        %v919 = vpop.permute.xlu0 %918
        %vm920 = vcmp.lt.s32.totalorder %v415, 114
        %v921 = vsel %vm920, %v917, %v919
        %v922 = vsel %vm920, %v919, %v917
        %v923 = vld [vmem:[#allocation3 + $0x1c0] sm:$0xff]
        %v924 = vld [vmem:[#allocation3 + $0x1c8] sm:$0xff]
        %v925 = vld [vmem:[#allocation3 + $0x1d0] sm:$0xff]
        %v926 = vld [vmem:[#allocation3 + $0x1d8] sm:$0xff]
        %v927 = vmul.f32 %v914, %v923
        %v928 = vmul.f32 %v915, %v924
        %v929 = vmul.f32 %v921, %v925
        %v930 = vmul.f32 %v922, %v926
        %v931 = vpack.c.bf16 %v929, %v927
        %v932 = vpack.c.bf16 %v930, %v928
        %v935 = vunpack.c.l.b16 %v931
        %v936 = vunpack.c.l.b16 %v932
        %v937 = vunpack.c.h.b16 %v931
        %v938 = vunpack.c.h.b16 %v932
        %v939 = vpack.c.b16 %v936, %v935
        %v940 = vpack.c.b16 %v938, %v937
        %943 = vst [vmem:[#allocation2 + $0xe0] sm:$0xff] %v939
        %944 = vst [vmem:[#allocation2 + $0xe8] sm:$0xff] %v940
        %945 = vrot.lane.b32.xlu0 %v408, 113
        %v946 = vpop.permute.xlu0 %945
        %947 = vrot.lane.b32.xlu0 %v409, 113
        %v948 = vpop.permute.xlu0 %947
        %vm949 = vcmp.lt.s32.totalorder %v415, 113
        %v950 = vsel %vm949, %v946, %v948
        %v951 = vsel %vm949, %v948, %v946
        %952 = vrot.lane.b32.xlu0 %v408, 112
        %v953 = vpop.permute.xlu0 %952
        %954 = vrot.lane.b32.xlu0 %v409, 112
        %v955 = vpop.permute.xlu0 %954
        %vm956 = vcmp.lt.s32.totalorder %v415, 112
        %v957 = vsel %vm956, %v953, %v955
        %v958 = vsel %vm956, %v955, %v953
        %v959 = vld [vmem:[#allocation3 + $0x1e0] sm:$0xff]
        %v960 = vld [vmem:[#allocation3 + $0x1e8] sm:$0xff]
        %v961 = vld [vmem:[#allocation3 + $0x1f0] sm:$0xff]
        %v962 = vld [vmem:[#allocation3 + $0x1f8] sm:$0xff]
        %v963 = vmul.f32 %v950, %v959
        %v964 = vmul.f32 %v951, %v960
        %v965 = vmul.f32 %v957, %v961
        %v966 = vmul.f32 %v958, %v962
        %v967 = vpack.c.bf16 %v965, %v963
        %v968 = vpack.c.bf16 %v966, %v964
        %v971 = vunpack.c.l.b16 %v967
        %v972 = vunpack.c.l.b16 %v968
        %v973 = vunpack.c.h.b16 %v967
        %v974 = vunpack.c.h.b16 %v968
        %v975 = vpack.c.b16 %v972, %v971
        %v976 = vpack.c.b16 %v974, %v973
        %979 = vst [vmem:[#allocation2 + $0xf0] sm:$0xff] %v975
        %980 = vst [vmem:[#allocation2 + $0xf8] sm:$0xff] %v976
        %981 = vrot.lane.b32.xlu0 %v408, 111
        %v982 = vpop.permute.xlu0 %981
        %983 = vrot.lane.b32.xlu0 %v409, 111
        %v984 = vpop.permute.xlu0 %983
        %vm985 = vcmp.lt.s32.totalorder %v415, 111
        %v986 = vsel %vm985, %v982, %v984
        %v987 = vsel %vm985, %v984, %v982
        %988 = vrot.lane.b32.xlu0 %v408, 110
        %v989 = vpop.permute.xlu0 %988
        %990 = vrot.lane.b32.xlu0 %v409, 110
        %v991 = vpop.permute.xlu0 %990
        %vm992 = vcmp.lt.s32.totalorder %v415, 110
        %v993 = vsel %vm992, %v989, %v991
        %v994 = vsel %vm992, %v991, %v989
        %v995 = vld [vmem:[#allocation3 + $0x200] sm:$0xff]
        %v996 = vld [vmem:[#allocation3 + $0x208] sm:$0xff]
        %v997 = vld [vmem:[#allocation3 + $0x210] sm:$0xff]
        %v998 = vld [vmem:[#allocation3 + $0x218] sm:$0xff]
        %v999 = vmul.f32 %v986, %v995
        %v1000 = vmul.f32 %v987, %v996
        %v1001 = vmul.f32 %v993, %v997
        %v1002 = vmul.f32 %v994, %v998
        %v1003 = vpack.c.bf16 %v1001, %v999
        %v1004 = vpack.c.bf16 %v1002, %v1000
        %v1007 = vunpack.c.l.b16 %v1003
        %v1008 = vunpack.c.l.b16 %v1004
        %v1009 = vunpack.c.h.b16 %v1003
        %v1010 = vunpack.c.h.b16 %v1004
        %v1011 = vpack.c.b16 %v1008, %v1007
        %v1012 = vpack.c.b16 %v1010, %v1009
        %1015 = vst [vmem:[#allocation2 + $0x100] sm:$0xff] %v1011
        %1016 = vst [vmem:[#allocation2 + $0x108] sm:$0xff] %v1012
        %1017 = vrot.lane.b32.xlu0 %v408, 109
        %v1018 = vpop.permute.xlu0 %1017
        %1019 = vrot.lane.b32.xlu0 %v409, 109
        %v1020 = vpop.permute.xlu0 %1019
        %vm1021 = vcmp.lt.s32.totalorder %v415, 109
        %v1022 = vsel %vm1021, %v1018, %v1020
        %v1023 = vsel %vm1021, %v1020, %v1018
        %1024 = vrot.lane.b32.xlu0 %v408, 99
        %v1025 = vpop.permute.xlu0 %1024
        %1026 = vrot.lane.b32.xlu0 %v409, 99
        %v1027 = vpop.permute.xlu0 %1026
        %vm1028 = vcmp.lt.s32.totalorder %v415, 99
        %v1029 = vsel %vm1028, %v1025, %v1027
        %v1030 = vsel %vm1028, %v1027, %v1025
        %v1031 = vld [vmem:[#allocation3 + $0x220] sm:$0xff]
        %v1032 = vld [vmem:[#allocation3 + $0x228] sm:$0xff]
        %v1033 = vld [vmem:[#allocation3 + $0x230] sm:$0xff]
        %v1034 = vld [vmem:[#allocation3 + $0x238] sm:$0xff]
        %v1035 = vmul.f32 %v1022, %v1031
        %v1036 = vmul.f32 %v1023, %v1032
        %v1037 = vmul.f32 %v1029, %v1033
        %v1038 = vmul.f32 %v1030, %v1034
        %v1039 = vpack.c.bf16 %v1037, %v1035
        %v1040 = vpack.c.bf16 %v1038, %v1036
        %v1043 = vunpack.c.l.b16 %v1039
        %v1044 = vunpack.c.l.b16 %v1040
        %v1045 = vunpack.c.h.b16 %v1039
        %v1046 = vunpack.c.h.b16 %v1040
        %v1047 = vpack.c.b16 %v1044, %v1043
        %v1048 = vpack.c.b16 %v1046, %v1045
        %1051 = vst [vmem:[#allocation2 + $0x110] sm:$0xff] %v1047
        %1052 = vst [vmem:[#allocation2 + $0x118] sm:$0xff] %v1048
        %1053 = vrot.lane.b32.xlu0 %v408, 98
        %v1054 = vpop.permute.xlu0 %1053
        %1055 = vrot.lane.b32.xlu0 %v409, 98
        %v1056 = vpop.permute.xlu0 %1055
        %vm1057 = vcmp.lt.s32.totalorder %v415, 98
        %v1058 = vsel %vm1057, %v1054, %v1056
        %v1059 = vsel %vm1057, %v1056, %v1054
        %1060 = vrot.lane.b32.xlu0 %v408, 97
        %v1061 = vpop.permute.xlu0 %1060
        %1062 = vrot.lane.b32.xlu0 %v409, 97
        %v1063 = vpop.permute.xlu0 %1062
        %vm1064 = vcmp.lt.s32.totalorder %v415, 97
        %v1065 = vsel %vm1064, %v1061, %v1063
        %v1066 = vsel %vm1064, %v1063, %v1061
        %v1067 = vld [vmem:[#allocation3 + $0x240] sm:$0xff]
        %v1068 = vld [vmem:[#allocation3 + $0x248] sm:$0xff]
        %v1069 = vld [vmem:[#allocation3 + $0x250] sm:$0xff]
        %v1070 = vld [vmem:[#allocation3 + $0x258] sm:$0xff]
        %v1071 = vmul.f32 %v1058, %v1067
        %v1072 = vmul.f32 %v1059, %v1068
        %v1073 = vmul.f32 %v1065, %v1069
        %v1074 = vmul.f32 %v1066, %v1070
        %v1075 = vpack.c.bf16 %v1073, %v1071
        %v1076 = vpack.c.bf16 %v1074, %v1072
        %v1079 = vunpack.c.l.b16 %v1075
        %v1080 = vunpack.c.l.b16 %v1076
        %v1081 = vunpack.c.h.b16 %v1075
        %v1082 = vunpack.c.h.b16 %v1076
        %v1083 = vpack.c.b16 %v1080, %v1079
        %v1084 = vpack.c.b16 %v1082, %v1081
        %1087 = vst [vmem:[#allocation2 + $0x120] sm:$0xff] %v1083
        %1088 = vst [vmem:[#allocation2 + $0x128] sm:$0xff] %v1084
        %1089 = vrot.lane.b32.xlu0 %v408, 96
        %v1090 = vpop.permute.xlu0 %1089
        %1091 = vrot.lane.b32.xlu0 %v409, 96
        %v1092 = vpop.permute.xlu0 %1091
        %vm1093 = vcmp.lt.s32.totalorder %v415, 96
        %v1094 = vsel %vm1093, %v1090, %v1092
        %v1095 = vsel %vm1093, %v1092, %v1090
        %1096 = vrot.lane.b32.xlu0 %v408, 95
        %v1097 = vpop.permute.xlu0 %1096
        %1098 = vrot.lane.b32.xlu0 %v409, 95
        %v1099 = vpop.permute.xlu0 %1098
        %vm1100 = vcmp.lt.s32.totalorder %v415, 95
        %v1101 = vsel %vm1100, %v1097, %v1099
        %v1102 = vsel %vm1100, %v1099, %v1097
        %v1103 = vld [vmem:[#allocation3 + $0x260] sm:$0xff]
        %v1104 = vld [vmem:[#allocation3 + $0x268] sm:$0xff]
        %v1105 = vld [vmem:[#allocation3 + $0x270] sm:$0xff]
        %v1106 = vld [vmem:[#allocation3 + $0x278] sm:$0xff]
        %v1107 = vmul.f32 %v1094, %v1103
        %v1108 = vmul.f32 %v1095, %v1104
        %v1109 = vmul.f32 %v1101, %v1105
        %v1110 = vmul.f32 %v1102, %v1106
        %v1111 = vpack.c.bf16 %v1109, %v1107
        %v1112 = vpack.c.bf16 %v1110, %v1108
        %v1115 = vunpack.c.l.b16 %v1111
        %v1116 = vunpack.c.l.b16 %v1112
        %v1117 = vunpack.c.h.b16 %v1111
        %v1118 = vunpack.c.h.b16 %v1112
        %v1119 = vpack.c.b16 %v1116, %v1115
        %v1120 = vpack.c.b16 %v1118, %v1117
        %1123 = vst [vmem:[#allocation2 + $0x130] sm:$0xff] %v1119
        %1124 = vst [vmem:[#allocation2 + $0x138] sm:$0xff] %v1120
        %1125 = vrot.lane.b32.xlu0 %v408, 94
        %v1126 = vpop.permute.xlu0 %1125
        %1127 = vrot.lane.b32.xlu0 %v409, 94
        %v1128 = vpop.permute.xlu0 %1127
        %vm1129 = vcmp.lt.s32.totalorder %v415, 94
        %v1130 = vsel %vm1129, %v1126, %v1128
        %v1131 = vsel %vm1129, %v1128, %v1126
        %1132 = vrot.lane.b32.xlu0 %v408, 93
        %v1133 = vpop.permute.xlu0 %1132
        %1134 = vrot.lane.b32.xlu0 %v409, 93
        %v1135 = vpop.permute.xlu0 %1134
        %vm1136 = vcmp.lt.s32.totalorder %v415, 93
        %v1137 = vsel %vm1136, %v1133, %v1135
        %v1138 = vsel %vm1136, %v1135, %v1133
        %v1139 = vld [vmem:[#allocation3 + $0x280] sm:$0xff]
        %v1140 = vld [vmem:[#allocation3 + $0x288] sm:$0xff]
        %v1141 = vld [vmem:[#allocation3 + $0x290] sm:$0xff]
        %v1142 = vld [vmem:[#allocation3 + $0x298] sm:$0xff]
        %v1143 = vmul.f32 %v1130, %v1139
        %v1144 = vmul.f32 %v1131, %v1140
        %v1145 = vmul.f32 %v1137, %v1141
        %v1146 = vmul.f32 %v1138, %v1142
        %v1147 = vpack.c.bf16 %v1145, %v1143
        %v1148 = vpack.c.bf16 %v1146, %v1144
        %v1151 = vunpack.c.l.b16 %v1147
        %v1152 = vunpack.c.l.b16 %v1148
        %v1153 = vunpack.c.h.b16 %v1147
        %v1154 = vunpack.c.h.b16 %v1148
        %v1155 = vpack.c.b16 %v1152, %v1151
        %v1156 = vpack.c.b16 %v1154, %v1153
        %1159 = vst [vmem:[#allocation2 + $0x140] sm:$0xff] %v1155
        %1160 = vst [vmem:[#allocation2 + $0x148] sm:$0xff] %v1156
        %1161 = vrot.lane.b32.xlu0 %v408, 83
        %v1162 = vpop.permute.xlu0 %1161
        %1163 = vrot.lane.b32.xlu0 %v409, 83
        %v1164 = vpop.permute.xlu0 %1163
        %vm1165 = vcmp.lt.s32.totalorder %v415, 83
        %v1166 = vsel %vm1165, %v1162, %v1164
        %v1167 = vsel %vm1165, %v1164, %v1162
        %1168 = vrot.lane.b32.xlu0 %v408, 82
        %v1169 = vpop.permute.xlu0 %1168
        %1170 = vrot.lane.b32.xlu0 %v409, 82
        %v1171 = vpop.permute.xlu0 %1170
        %vm1172 = vcmp.lt.s32.totalorder %v415, 82
        %v1173 = vsel %vm1172, %v1169, %v1171
        %v1174 = vsel %vm1172, %v1171, %v1169
        %v1175 = vld [vmem:[#allocation3 + $0x2a0] sm:$0xff]
        %v1176 = vld [vmem:[#allocation3 + $0x2a8] sm:$0xff]
        %v1177 = vld [vmem:[#allocation3 + $0x2b0] sm:$0xff]
        %v1178 = vld [vmem:[#allocation3 + $0x2b8] sm:$0xff]
        %v1179 = vmul.f32 %v1166, %v1175
        %v1180 = vmul.f32 %v1167, %v1176
        %v1181 = vmul.f32 %v1173, %v1177
        %v1182 = vmul.f32 %v1174, %v1178
        %v1183 = vpack.c.bf16 %v1181, %v1179
        %v1184 = vpack.c.bf16 %v1182, %v1180
        %v1187 = vunpack.c.l.b16 %v1183
        %v1188 = vunpack.c.l.b16 %v1184
        %v1189 = vunpack.c.h.b16 %v1183
        %v1190 = vunpack.c.h.b16 %v1184
        %v1191 = vpack.c.b16 %v1188, %v1187
        %v1192 = vpack.c.b16 %v1190, %v1189
        %1195 = vst [vmem:[#allocation2 + $0x150] sm:$0xff] %v1191
        %1196 = vst [vmem:[#allocation2 + $0x158] sm:$0xff] %v1192
        %1197 = vrot.lane.b32.xlu0 %v408, 81
        %v1198 = vpop.permute.xlu0 %1197
        %1199 = vrot.lane.b32.xlu0 %v409, 81
        %v1200 = vpop.permute.xlu0 %1199
        %vm1201 = vcmp.lt.s32.totalorder %v415, 81
        %v1202 = vsel %vm1201, %v1198, %v1200
        %v1203 = vsel %vm1201, %v1200, %v1198
        %1204 = vrot.lane.b32.xlu0 %v408, 80
        %v1205 = vpop.permute.xlu0 %1204
        %1206 = vrot.lane.b32.xlu0 %v409, 80
        %v1207 = vpop.permute.xlu0 %1206
        %vm1208 = vcmp.lt.s32.totalorder %v415, 80
        %v1209 = vsel %vm1208, %v1205, %v1207
        %v1210 = vsel %vm1208, %v1207, %v1205
        %v1211 = vld [vmem:[#allocation3 + $0x2c0] sm:$0xff]
        %v1212 = vld [vmem:[#allocation3 + $0x2c8] sm:$0xff]
        %v1213 = vld [vmem:[#allocation3 + $0x2d0] sm:$0xff]
        %v1214 = vld [vmem:[#allocation3 + $0x2d8] sm:$0xff]
        %v1215 = vmul.f32 %v1202, %v1211
        %v1216 = vmul.f32 %v1203, %v1212
        %v1217 = vmul.f32 %v1209, %v1213
        %v1218 = vmul.f32 %v1210, %v1214
        %v1219 = vpack.c.bf16 %v1217, %v1215
        %v1220 = vpack.c.bf16 %v1218, %v1216
        %v1223 = vunpack.c.l.b16 %v1219
        %v1224 = vunpack.c.l.b16 %v1220
        %v1225 = vunpack.c.h.b16 %v1219
        %v1226 = vunpack.c.h.b16 %v1220
        %v1227 = vpack.c.b16 %v1224, %v1223
        %v1228 = vpack.c.b16 %v1226, %v1225
        %1231 = vst [vmem:[#allocation2 + $0x160] sm:$0xff] %v1227
        %1232 = vst [vmem:[#allocation2 + $0x168] sm:$0xff] %v1228
        %1233 = vrot.lane.b32.xlu0 %v408, 79
        %v1234 = vpop.permute.xlu0 %1233
        %1235 = vrot.lane.b32.xlu0 %v409, 79
        %v1236 = vpop.permute.xlu0 %1235
        %vm1237 = vcmp.lt.s32.totalorder %v415, 79
        %v1238 = vsel %vm1237, %v1234, %v1236
        %v1239 = vsel %vm1237, %v1236, %v1234
        %1240 = vrot.lane.b32.xlu0 %v408, 78
        %v1241 = vpop.permute.xlu0 %1240
        %1242 = vrot.lane.b32.xlu0 %v409, 78
        %v1243 = vpop.permute.xlu0 %1242
        %vm1244 = vcmp.lt.s32.totalorder %v415, 78
        %v1245 = vsel %vm1244, %v1241, %v1243
        %v1246 = vsel %vm1244, %v1243, %v1241
        %v1247 = vld [vmem:[#allocation3 + $0x2e0] sm:$0xff]
        %v1248 = vld [vmem:[#allocation3 + $0x2e8] sm:$0xff]
        %v1249 = vld [vmem:[#allocation3 + $0x2f0] sm:$0xff]
        %v1250 = vld [vmem:[#allocation3 + $0x2f8] sm:$0xff]
        %v1251 = vmul.f32 %v1238, %v1247
        %v1252 = vmul.f32 %v1239, %v1248
        %v1253 = vmul.f32 %v1245, %v1249
        %v1254 = vmul.f32 %v1246, %v1250
        %v1255 = vpack.c.bf16 %v1253, %v1251
        %v1256 = vpack.c.bf16 %v1254, %v1252
        %v1259 = vunpack.c.l.b16 %v1255
        %v1260 = vunpack.c.l.b16 %v1256
        %v1261 = vunpack.c.h.b16 %v1255
        %v1262 = vunpack.c.h.b16 %v1256
        %v1263 = vpack.c.b16 %v1260, %v1259
        %v1264 = vpack.c.b16 %v1262, %v1261
        %1267 = vst [vmem:[#allocation2 + $0x170] sm:$0xff] %v1263
        %1268 = vst [vmem:[#allocation2 + $0x178] sm:$0xff] %v1264
        %1269 = vrot.lane.b32.xlu0 %v408, 77
        %v1270 = vpop.permute.xlu0 %1269
        %1271 = vrot.lane.b32.xlu0 %v409, 77
        %v1272 = vpop.permute.xlu0 %1271
        %vm1273 = vcmp.lt.s32.totalorder %v415, 77
        %v1274 = vsel %vm1273, %v1270, %v1272
        %v1275 = vsel %vm1273, %v1272, %v1270
        %v1276 = vld [vmem:[#allocation3 + $0x300] sm:$0xff]
        %v1277 = vld [vmem:[#allocation3 + $0x308] sm:$0xff]
        %v1278 = vld [vmem:[#allocation3 + $0x310] sm:$0xff]
        %v1279 = vld [vmem:[#allocation3 + $0x318] sm:$0xff]
        %v1280 = vmul.f32 %v1274, %v1276
        %v1281 = vmul.f32 %v1275, %v1277
        %v1282 = vmul.f32 %v408, %v1278
        %v1283 = vmul.f32 %v409, %v1279
        %v1284 = vpack.c.bf16 %v1282, %v1280
        %v1285 = vpack.c.bf16 %v1283, %v1281
        %v1288 = vunpack.c.l.b16 %v1284
        %v1289 = vunpack.c.l.b16 %v1285
        %v1290 = vunpack.c.h.b16 %v1284
        %v1291 = vunpack.c.h.b16 %v1285
        %v1292 = vpack.c.b16 %v1289, %v1288
        %v1293 = vpack.c.b16 %v1291, %v1290
        %1296 = vst [vmem:[#allocation2 + $0x180] sm:$0xff] %v1292
        %1297 = vst [vmem:[#allocation2 + $0x188] sm:$0xff] %v1293
        %v1298 = vld [vmem:[%s2] sm:$0xff]
        %v1299 = vld [vmem:[%s2 + $0x8] sm:$0xff]
        %v1300 = vld [vmem:[#allocation2] sm:$0xff]
        %v1301 = vld [vmem:[#allocation2 + $0x8] sm:$0xff]
        %v1302 = vld [vmem:[#allocation2 + $0x10] sm:$0xff]
        %v1303 = vld [vmem:[#allocation2 + $0x18] sm:$0xff]
        %v1304 = vld [vmem:[#allocation2 + $0x20] sm:$0xff]
        %v1305 = vld [vmem:[#allocation2 + $0x28] sm:$0xff]
        %v1306 = vld [vmem:[#allocation2 + $0x30] sm:$0xff]
        %v1307 = vld [vmem:[#allocation2 + $0x38] sm:$0xff]
        %v1308 = vld [vmem:[#allocation2 + $0x40] sm:$0xff]
        %v1309 = vld [vmem:[#allocation2 + $0x48] sm:$0xff]
        %v1310 = vld [vmem:[#allocation2 + $0x50] sm:$0xff]
        %v1311 = vld [vmem:[#allocation2 + $0x58] sm:$0xff]
        %v1312 = vld [vmem:[#allocation2 + $0x60] sm:$0xff]
        %v1313 = vld [vmem:[#allocation2 + $0x68] sm:$0xff]
        %v1314 = vld [vmem:[#allocation2 + $0x70] sm:$0xff]
        %v1315 = vld [vmem:[#allocation2 + $0x78] sm:$0xff]
        %v1316 = vld [vmem:[#allocation2 + $0x80] sm:$0xff]
        %v1317 = vld [vmem:[#allocation2 + $0x88] sm:$0xff]
        %v1318 = vld [vmem:[#allocation2 + $0x90] sm:$0xff]
        %v1319 = vld [vmem:[#allocation2 + $0x98] sm:$0xff]
        %v1320 = vld [vmem:[#allocation2 + $0xa0] sm:$0xff]
        %v1321 = vld [vmem:[#allocation2 + $0xa8] sm:$0xff]
        %v1322 = vld [vmem:[#allocation2 + $0xb0] sm:$0xff]
        %v1323 = vld [vmem:[#allocation2 + $0xb8] sm:$0xff]
        %v1324 = vld [vmem:[#allocation2 + $0xc0] sm:$0xff]
        %v1325 = vld [vmem:[#allocation2 + $0xc8] sm:$0xff]
        %v1326 = vld [vmem:[#allocation2 + $0xd0] sm:$0xff]
        %v1327 = vld [vmem:[#allocation2 + $0xd8] sm:$0xff]
        %v1328 = vld [vmem:[#allocation2 + $0xe0] sm:$0xff]
        %v1329 = vld [vmem:[#allocation2 + $0xe8] sm:$0xff]
        %v1330 = vld [vmem:[#allocation2 + $0xf0] sm:$0xff]
        %v1331 = vld [vmem:[#allocation2 + $0xf8] sm:$0xff]
        %v1332 = vld [vmem:[#allocation2 + $0x100] sm:$0xff]
        %v1333 = vld [vmem:[#allocation2 + $0x108] sm:$0xff]
        %v1334 = vld [vmem:[#allocation2 + $0x110] sm:$0xff]
        %v1335 = vld [vmem:[#allocation2 + $0x118] sm:$0xff]
        %v1336 = vld [vmem:[#allocation2 + $0x120] sm:$0xff]
        %v1337 = vld [vmem:[#allocation2 + $0x128] sm:$0xff]
        %v1338 = vld [vmem:[#allocation2 + $0x130] sm:$0xff]
        %v1339 = vld [vmem:[#allocation2 + $0x138] sm:$0xff]
        %v1340 = vld [vmem:[#allocation2 + $0x140] sm:$0xff]
        %v1341 = vld [vmem:[#allocation2 + $0x148] sm:$0xff]
        %v1342 = vld [vmem:[#allocation2 + $0x150] sm:$0xff]
        %v1343 = vld [vmem:[#allocation2 + $0x158] sm:$0xff]
        %v1344 = vld [vmem:[#allocation2 + $0x160] sm:$0xff]
        %v1345 = vld [vmem:[#allocation2 + $0x168] sm:$0xff]
        %v1346 = vld [vmem:[#allocation2 + $0x170] sm:$0xff]
        %v1347 = vld [vmem:[#allocation2 + $0x178] sm:$0xff]
        %v1348 = vld [vmem:[#allocation2 + $0x180] sm:$0xff]
        %v1349 = vld [vmem:[#allocation2 + $0x188] sm:$0xff]
        %v1350 = vld [vmem:[%s6] sm:$0xff]
        %1352 = vset.pattern.permute.xlu0 0
        %1353 = vperm.xlu0 %1352, %v1350
        %v1354 = vpop.permute.xlu0 %1353
        %v1358 = vunpack.c.l.b16 %v1298
        %v1359 = vunpack.c.h.b16 %v1298
        %v1360 = vunpack.c.l.b16 %v1299
        %v1361 = vunpack.c.h.b16 %v1299
        %v1362 = vpack.c.b16 %v1358, %v1358
        %v1363 = vpack.c.b16 %v1359, %v1359
        %v1364 = vpack.c.b16 %v1360, %v1360
        %v1365 = vpack.c.b16 %v1361, %v1361
        %v1419 = vunpack.c.l.b16 %v1300
        %v1420 = vunpack.c.h.b16 %v1300
        %v1421 = vunpack.c.l.b16 %v1301
        %v1422 = vunpack.c.h.b16 %v1301
        %v1423 = vunpack.c.l.b16 %v1302
        %v1424 = vunpack.c.h.b16 %v1302
        %v1425 = vunpack.c.l.b16 %v1303
        %v1426 = vunpack.c.h.b16 %v1303
        %v1427 = vunpack.c.l.b16 %v1304
        %v1428 = vunpack.c.h.b16 %v1304
        %v1429 = vunpack.c.l.b16 %v1305
        %v1430 = vunpack.c.h.b16 %v1305
        %v1431 = vunpack.c.l.b16 %v1306
        %v1432 = vunpack.c.h.b16 %v1306
        %v1433 = vunpack.c.l.b16 %v1307
        %v1434 = vunpack.c.h.b16 %v1307
        %v1435 = vunpack.c.l.b16 %v1308
        %v1436 = vunpack.c.h.b16 %v1308
        %v1437 = vunpack.c.l.b16 %v1309
        %v1438 = vunpack.c.h.b16 %v1309
        %v1439 = vunpack.c.l.b16 %v1310
        %v1440 = vunpack.c.h.b16 %v1310
        %v1441 = vunpack.c.l.b16 %v1311
        %v1442 = vunpack.c.h.b16 %v1311
        %v1443 = vunpack.c.l.b16 %v1312
        %v1444 = vunpack.c.h.b16 %v1312
        %v1445 = vunpack.c.l.b16 %v1313
        %v1446 = vunpack.c.h.b16 %v1313
        %v1447 = vunpack.c.l.b16 %v1314
        %v1448 = vunpack.c.h.b16 %v1314
        %v1449 = vunpack.c.l.b16 %v1315
        %v1450 = vunpack.c.h.b16 %v1315
        %v1451 = vunpack.c.l.b16 %v1316
        %v1452 = vunpack.c.h.b16 %v1316
        %v1453 = vunpack.c.l.b16 %v1317
        %v1454 = vunpack.c.h.b16 %v1317
        %v1455 = vunpack.c.l.b16 %v1318
        %v1456 = vunpack.c.h.b16 %v1318
        %v1457 = vunpack.c.l.b16 %v1319
        %v1458 = vunpack.c.h.b16 %v1319
        %v1459 = vunpack.c.l.b16 %v1320
        %v1460 = vunpack.c.h.b16 %v1320
        %v1461 = vunpack.c.l.b16 %v1321
        %v1462 = vunpack.c.h.b16 %v1321
        %v1463 = vunpack.c.l.b16 %v1322
        %v1464 = vunpack.c.h.b16 %v1322
        %v1465 = vunpack.c.l.b16 %v1323
        %v1466 = vunpack.c.h.b16 %v1323
        %v1467 = vunpack.c.l.b16 %v1324
        %v1468 = vunpack.c.h.b16 %v1324
        %v1469 = vunpack.c.l.b16 %v1325
        %v1470 = vunpack.c.h.b16 %v1325
        %v1471 = vunpack.c.l.b16 %v1326
        %v1472 = vunpack.c.h.b16 %v1326
        %v1473 = vunpack.c.l.b16 %v1327
        %v1474 = vunpack.c.h.b16 %v1327
        %v1475 = vunpack.c.l.b16 %v1328
        %v1476 = vunpack.c.h.b16 %v1328
        %v1477 = vunpack.c.l.b16 %v1329
        %v1478 = vunpack.c.h.b16 %v1329
        %v1479 = vunpack.c.l.b16 %v1330
        %v1480 = vunpack.c.h.b16 %v1330
        %v1481 = vunpack.c.l.b16 %v1331
        %v1482 = vunpack.c.h.b16 %v1331
        %v1483 = vunpack.c.l.b16 %v1332
        %v1484 = vunpack.c.h.b16 %v1332
        %v1485 = vunpack.c.l.b16 %v1333
        %v1486 = vunpack.c.h.b16 %v1333
        %v1487 = vunpack.c.l.b16 %v1334
        %v1488 = vunpack.c.h.b16 %v1334
        %v1489 = vunpack.c.l.b16 %v1335
        %v1490 = vunpack.c.h.b16 %v1335
        %v1491 = vunpack.c.l.b16 %v1336
        %v1492 = vunpack.c.h.b16 %v1336
        %v1493 = vunpack.c.l.b16 %v1337
        %v1494 = vunpack.c.h.b16 %v1337
        %v1495 = vunpack.c.l.b16 %v1338
        %v1496 = vunpack.c.h.b16 %v1338
        %v1497 = vunpack.c.l.b16 %v1339
        %v1498 = vunpack.c.h.b16 %v1339
        %v1499 = vunpack.c.l.b16 %v1340
        %v1500 = vunpack.c.h.b16 %v1340
        %v1501 = vunpack.c.l.b16 %v1341
        %v1502 = vunpack.c.h.b16 %v1341
        %v1503 = vunpack.c.l.b16 %v1342
        %v1504 = vunpack.c.h.b16 %v1342
        %v1505 = vunpack.c.l.b16 %v1343
        %v1506 = vunpack.c.h.b16 %v1343
        %v1507 = vunpack.c.l.b16 %v1344
        %v1508 = vunpack.c.h.b16 %v1344
        %v1509 = vunpack.c.l.b16 %v1345
        %v1510 = vunpack.c.h.b16 %v1345
        %v1511 = vunpack.c.l.b16 %v1346
        %v1512 = vunpack.c.h.b16 %v1346
        %v1513 = vunpack.c.l.b16 %v1347
        %v1514 = vunpack.c.h.b16 %v1347
        %v1515 = vunpack.c.l.b16 %v1348
        %v1516 = vunpack.c.h.b16 %v1348
        %v1517 = vunpack.c.l.b16 %v1349
        %v1518 = vunpack.c.h.b16 %v1349
        %v1519 = vpack.c.b16 %v1421, %v1419
        %v1520 = vpack.c.b16 %v1422, %v1420
        %v1521 = vpack.c.b16 %v1425, %v1423
        %v1522 = vpack.c.b16 %v1426, %v1424
        %v1523 = vpack.c.b16 %v1429, %v1427
        %v1524 = vpack.c.b16 %v1430, %v1428
        %v1525 = vpack.c.b16 %v1433, %v1431
        %v1526 = vpack.c.b16 %v1434, %v1432
        %v1527 = vpack.c.b16 %v1437, %v1435
        %v1528 = vpack.c.b16 %v1438, %v1436
        %v1529 = vpack.c.b16 %v1441, %v1439
        %v1530 = vpack.c.b16 %v1442, %v1440
        %v1531 = vpack.c.b16 %v1445, %v1443
        %v1532 = vpack.c.b16 %v1446, %v1444
        %v1533 = vpack.c.b16 %v1449, %v1447
        %v1534 = vpack.c.b16 %v1450, %v1448
        %v1535 = vpack.c.b16 %v1453, %v1451
        %v1536 = vpack.c.b16 %v1454, %v1452
        %v1537 = vpack.c.b16 %v1457, %v1455
        %v1538 = vpack.c.b16 %v1458, %v1456
        %v1539 = vpack.c.b16 %v1461, %v1459
        %v1540 = vpack.c.b16 %v1462, %v1460
        %v1541 = vpack.c.b16 %v1465, %v1463
        %v1542 = vpack.c.b16 %v1466, %v1464
        %v1543 = vpack.c.b16 %v1469, %v1467
        %v1544 = vpack.c.b16 %v1470, %v1468
        %v1545 = vpack.c.b16 %v1473, %v1471
        %v1546 = vpack.c.b16 %v1474, %v1472
        %v1547 = vpack.c.b16 %v1477, %v1475
        %v1548 = vpack.c.b16 %v1478, %v1476
        %v1549 = vpack.c.b16 %v1481, %v1479
        %v1550 = vpack.c.b16 %v1482, %v1480
        %v1551 = vpack.c.b16 %v1485, %v1483
        %v1552 = vpack.c.b16 %v1486, %v1484
        %v1553 = vpack.c.b16 %v1489, %v1487
        %v1554 = vpack.c.b16 %v1490, %v1488
        %v1555 = vpack.c.b16 %v1493, %v1491
        %v1556 = vpack.c.b16 %v1494, %v1492
        %v1557 = vpack.c.b16 %v1497, %v1495
        %v1558 = vpack.c.b16 %v1498, %v1496
        %v1559 = vpack.c.b16 %v1501, %v1499
        %v1560 = vpack.c.b16 %v1502, %v1500
        %v1561 = vpack.c.b16 %v1505, %v1503
        %v1562 = vpack.c.b16 %v1506, %v1504
        %v1563 = vpack.c.b16 %v1509, %v1507
        %v1564 = vpack.c.b16 %v1510, %v1508
        %v1565 = vpack.c.b16 %v1513, %v1511
        %v1566 = vpack.c.b16 %v1514, %v1512
        %v1567 = vpack.c.b16 %v1517, %v1515
        %v1568 = vpack.c.b16 %v1518, %v1516
        %v1620 = vsel %vm333, %v1365, 0
        %1622 = vmatprep.subr.bf16.mxu0 %v1534
        %1623 = vmatpush1.bf16.msra.mxu0 %v1533
        %1624 = vmatprep.subr.bf16.mxu0 %v1532
        %1625 = vmatpush1.bf16.msra.mxu0 %v1531
        %1626 = vmatprep.subr.bf16.mxu0 %v1530
        %1627 = vmatpush1.bf16.msra.mxu0 %v1529
        %1628 = vmatprep.subr.bf16.mxu0 %v1528
        %1629 = vmatpush1.bf16.msra.mxu0 %v1527
        %1630 = vmatprep.subr.bf16.mxu0 %v1526
        %1631 = vmatpush1.bf16.msra.mxu0 %v1525
        %1632 = vmatprep.subr.bf16.mxu0 %v1524
        %1633 = vmatpush1.bf16.msra.mxu0 %v1523
        %1634 = vmatprep.subr.bf16.mxu0 %v1522
        %1635 = vmatpush1.bf16.msra.mxu0 %v1521
        %1636 = vmatprep.subr.bf16.mxu0 %v1520
        %1637 = vmatpush1.bf16.msra.mxu0 %v1519
        %1638 = vmatprep.subr.bf16.mxu0 %v1550
        %1639 = vmatpush2.bf16.msra.mxu0 %v1549
        %1640 = vmatprep.subr.bf16.mxu0 %v1548
        %1641 = vmatpush2.bf16.msra.mxu0 %v1547
        %1642 = vmatprep.subr.bf16.mxu0 %v1546
        %1643 = vmatpush2.bf16.msra.mxu0 %v1545
        %1644 = vmatprep.subr.bf16.mxu0 %v1544
        %1645 = vmatpush2.bf16.msra.mxu0 %v1543
        %1646 = vmatprep.subr.bf16.mxu0 %v1542
        %1647 = vmatpush2.bf16.msra.mxu0 %v1541
        %1648 = vmatprep.subr.bf16.mxu0 %v1540
        %1649 = vmatpush2.bf16.msra.mxu0 %v1539
        %1650 = vmatprep.subr.bf16.mxu0 %v1538
        %1651 = vmatpush2.bf16.msra.mxu0 %v1537
        %1652 = vmatprep.subr.bf16.mxu0 %v1536
        %1653 = vmatpush2.bf16.msra.mxu0 %v1535
        %1654 = vmatprep.mubr.bf16.mxu0 %v1363
        %1655 = vmatmul.mubr.bf16.gmra.mxu0 %v1362
        %v1656 = vpop.f32.mrf.mxu0
        %v1657 = vadd.f32 %v1354, %v1656
        %v1658 = vpop.f32.mrf.mxu0
        %v1659 = vadd.f32 %v1354, %v1658
        %v1660 = vpop.f32.mrf.mxu0
        %v1661 = vpop.f32.mrf.mxu0
        %1662 = vdwg.mxu0
        %1663 = vmatprep.subr.bf16.mxu0 %v1566
        %1664 = vmatpush1.bf16.msra.mxu0 %v1565
        %1665 = vmatprep.subr.bf16.mxu0 %v1564
        %1666 = vmatpush1.bf16.msra.mxu0 %v1563
        %1667 = vmatprep.subr.bf16.mxu0 %v1562
        %1668 = vmatpush1.bf16.msra.mxu0 %v1561
        %1669 = vmatprep.subr.bf16.mxu0 %v1560
        %1670 = vmatpush1.bf16.msra.mxu0 %v1559
        %1671 = vmatprep.subr.bf16.mxu0 %v1558
        %1672 = vmatpush1.bf16.msra.mxu0 %v1557
        %1673 = vmatprep.subr.bf16.mxu0 %v1556
        %1674 = vmatpush1.bf16.msra.mxu0 %v1555
        %1675 = vmatprep.subr.bf16.mxu0 %v1554
        %1676 = vmatpush1.bf16.msra.mxu0 %v1553
        %1677 = vmatprep.subr.bf16.mxu0 %v1552
        %1678 = vmatpush1.bf16.msra.mxu0 %v1551
        %1679 = vmatprep.subr.bf16.mxu0 0
        %1680 = vmatpush2.bf16.msra.mxu0 0
        %1681 = vmatprep.subr.bf16.mxu0 0
        %1682 = vmatpush2.bf16.msra.mxu0 0
        %1683 = vmatprep.subr.bf16.mxu0 0
        %1684 = vmatpush2.bf16.msra.mxu0 0
        %1685 = vmatprep.subr.bf16.mxu0 0
        %1686 = vmatpush2.bf16.msra.mxu0 0
        %1687 = vmatprep.subr.bf16.mxu0 0
        %1688 = vmatpush2.bf16.msra.mxu0 0
        %1689 = vmatprep.subr.bf16.mxu0 0
        %1690 = vmatpush2.bf16.msra.mxu0 0
        %1691 = vmatprep.subr.bf16.mxu0 0
        %1692 = vmatpush2.bf16.msra.mxu0 0
        %1693 = vmatprep.subr.bf16.mxu0 %v1568
        %1694 = vmatpush2.bf16.msra.mxu0 %v1567
        %1695 = vmatprep.mubr.bf16.mxu0 %v1620
        %1696 = vmatmul.mubr.bf16.gmra.mxu0 %v1364
        %v1697 = vpop.f32.mrf.mxu0
        %v1698 = vadd.f32 %v1657, %v1697
        %v1699 = vpop.f32.mrf.mxu0
        %v1700 = vadd.f32 %v1659, %v1699
        %v1701 = vpop.f32.mrf.mxu0
        %v1702 = vpop.f32.mrf.mxu0
        %1703 = vdwg.mxu0
        %v1704 = vmax.f32 %v1698, 0.0
        %v1705 = vmax.f32 %v1700, 0.0
        %v1706 = vld [vmem:[%s3] sm:$0xff]
        %v1707 = vld [vmem:[%s3 + $0x8] sm:$0xff]
        %v1708 = vld [vmem:[%s3 + $0x10] sm:$0xff]
        %v1709 = vld [vmem:[%s3 + $0x18] sm:$0xff]
        %v1710 = vld [vmem:[%s7] sm:$0xff]
        %v1711 = vld [vmem:[%s7 + $0x8] sm:$0xff]
        %v1712 = vld [vmem:[%s7 + $0x10] sm:$0xff]
        %v1713 = vld [vmem:[%s7 + $0x18] sm:$0xff]
        %1715 = vset.pattern.permute.xlu0 0
        %1716 = vperm.xlu0 %1715, %v1710
        %v1717 = vpop.permute.xlu0 %1716
        %1720 = vset.pattern.permute.xlu0 0
        %1721 = vperm.xlu0 %1720, %v1711
        %v1722 = vpop.permute.xlu0 %1721
        %1725 = vset.pattern.permute.xlu0 0
        %1726 = vperm.xlu0 %1725, %v1712
        %v1727 = vpop.permute.xlu0 %1726
        %1730 = vset.pattern.permute.xlu0 0
        %1731 = vperm.xlu0 %1730, %v1713
        %v1732 = vpop.permute.xlu0 %1731
        %vm1734 = vcmask 64512
        %v1736 = vsel %vm1734, %v1706, 0
        %v1739 = vsel %vm1734, %v1707, 0
        %v1742 = vsel %vm1734, %v1708, 0
        %v1745 = vsel %vm1734, %v1709, 0
        %1747 = vmatprep.subr.mxu0 0.0
        %1748 = vmatpush1.msra.mxu0 0.0
        %1749 = vmatprep.subr.mxu0 0.0
        %1750 = vmatpush1.msra.mxu0 0.0
        %1751 = vmatprep.subr.mxu0 0.0
        %1752 = vmatpush1.msra.mxu0 0.0
        %1753 = vmatprep.subr.mxu0 0.0
        %1754 = vmatpush1.msra.mxu0 0.0
        %1755 = vmatprep.subr.mxu0 0.0
        %1756 = vmatpush1.msra.mxu0 0.0
        %1757 = vmatprep.subr.mxu0 0.0
        %1758 = vmatpush1.msra.mxu0 0.0
        %1759 = vmatprep.subr.mxu0 0.0
        %1760 = vmatpush1.msra.mxu0 0.0
        %1761 = vmatprep.subr.mxu0 0.0
        %1762 = vmatpush1.msra.mxu0 0.0
        %1763 = vmatprep.subr.mxu0 0.0
        %1764 = vmatpush1.msra.mxu0 0.0
        %1765 = vmatprep.subr.mxu0 0.0
        %1766 = vmatpush1.msra.mxu0 0.0
        %1767 = vmatprep.subr.mxu0 0.0
        %1768 = vmatpush1.msra.mxu0 0.0
        %1769 = vmatprep.subr.mxu0 0.0
        %1770 = vmatpush1.msra.mxu0 0.0
        %1771 = vmatprep.subr.mxu0 0.0
        %1772 = vmatpush1.msra.mxu0 0.0
        %1773 = vmatprep.subr.mxu0 0.0
        %1774 = vmatpush1.msra.mxu0 0.0
        %1775 = vmatprep.subr.mxu0 0.0
        %1776 = vmatpush1.msra.mxu0 0.0
        %1777 = vmatprep.subr.mxu0 %v1705
        %1778 = vmatpush1.msra.mxu0 %v1704
        %1779 = vmatprep.subr.mxu0 0.0
        %1780 = vmatpush2.msra.mxu0 0.0
        %1781 = vmatprep.subr.mxu0 0.0
        %1782 = vmatpush2.msra.mxu0 0.0
        %1783 = vmatprep.subr.mxu0 0.0
        %1784 = vmatpush2.msra.mxu0 0.0
        %1785 = vmatprep.subr.mxu0 0.0
        %1786 = vmatpush2.msra.mxu0 0.0
        %1787 = vmatprep.subr.mxu0 0.0
        %1788 = vmatpush2.msra.mxu0 0.0
        %1789 = vmatprep.subr.mxu0 0.0
        %1790 = vmatpush2.msra.mxu0 0.0
        %1791 = vmatprep.subr.mxu0 0.0
        %1792 = vmatpush2.msra.mxu0 0.0
        %1793 = vmatprep.subr.mxu0 0.0
        %1794 = vmatpush2.msra.mxu0 0.0
        %1795 = vmatprep.subr.mxu0 0.0
        %1796 = vmatpush2.msra.mxu0 0.0
        %1797 = vmatprep.subr.mxu0 0.0
        %1798 = vmatpush2.msra.mxu0 0.0
        %1799 = vmatprep.subr.mxu0 0.0
        %1800 = vmatpush2.msra.mxu0 0.0
        %1801 = vmatprep.subr.mxu0 0.0
        %1802 = vmatpush2.msra.mxu0 0.0
        %1803 = vmatprep.subr.mxu0 0.0
        %1804 = vmatpush2.msra.mxu0 0.0
        %1805 = vmatprep.subr.mxu0 0.0
        %1806 = vmatpush2.msra.mxu0 0.0
        %1807 = vmatprep.subr.mxu0 0.0
        %1808 = vmatpush2.msra.mxu0 0.0
        %1809 = vmatprep.subr.mxu0 0.0
        %1810 = vmatpush2.msra.mxu0 0.0
        %1811 = vmatprep.mubr.f32.mxu0 0.0
        %1812 = vmatmul.mubr.f32.gmra.mxu0 %v1736
        %v1813 = vpop.f32.mrf.mxu0
        %v1814 = vadd.f32 %v1717, %v1813
        %v1815 = vpop.f32.mrf.mxu0
        %v1816 = vadd.f32 %v1717, %v1815
        %1817 = vmatprep.mubr.f32.mxu0 0.0
        %1818 = vmatmul.mubr.f32.gmra.mxu0 %v1739
        %v1819 = vpop.f32.mrf.mxu0
        %v1820 = vadd.f32 %v1722, %v1819
        %v1821 = vpop.f32.mrf.mxu0
        %v1822 = vadd.f32 %v1722, %v1821
        %1823 = vmatprep.mubr.f32.mxu0 0.0
        %1824 = vmatmul.mubr.f32.gmra.mxu0 %v1742
        %v1825 = vpop.f32.mrf.mxu0
        %v1826 = vadd.f32 %v1727, %v1825
        %v1827 = vpop.f32.mrf.mxu0
        %v1828 = vadd.f32 %v1727, %v1827
        %1829 = vmatprep.mubr.f32.mxu0 0.0
        %1830 = vmatmul.mubr.f32.gmra.mxu0 %v1745
        %v1831 = vpop.f32.mrf.mxu0
        %v1832 = vadd.f32 %v1732, %v1831
        %v1833 = vpop.f32.mrf.mxu0
        %v1834 = vadd.f32 %v1732, %v1833
        %1835 = vdwg.mxu0
        %v1836 = vadd.f32 %v1814, %v322
        %v1837 = vadd.f32 %v1816, %v323
        %v1838 = vadd.f32 %v1820, %v324
        %v1839 = vadd.f32 %v1822, %v325
        %1840 = vst [vmem:[%s320] sm:$0xff] %v1836
        %1841 = vst [vmem:[%s320 + $0x8] sm:$0xff] %v1837
        %1842 = vst [vmem:[%s320 + $0x10] sm:$0xff] %v1838
        %1843 = vst [vmem:[%s320 + $0x18] sm:$0xff] %v1839
        %1844 = vst [vmem:[%s320 + $0x20] sm:$0xff] %v1826
        %1845 = vst [vmem:[%s320 + $0x28] sm:$0xff] %v1828
        %1846 = vst [vmem:[%s320 + $0x30] sm:$0xff] %v1832
        %1847 = vst [vmem:[%s320 + $0x38] sm:$0xff] %v1834
        %p1848 = scmp.lt.s32.totalorder %s20, 1
        %s1849 = scalar_select %p1848, %s20, 1
        %s1850 = smul.addr %s1849, 8
        %s1851 = smul.addr %s1850, 8
        %s1852 = scalar_lea.vmem %s8, %s1851
        // Predicated region
        $region57: #{bottleneck_forward.1} parent=51 // pred_check
          %p1853 = pneg %p211
        $region58: #{bottleneck_forward.1} parent=51 // pred_check_branch
          %1855 = sbr.rel (%p1853) target = $region60
        $region59: #{bottleneck_forward.1} parent=51 // pred_region
          _
        $region60: #{bottleneck_forward.1} parent=51 // pred_fallthru
          _
      $region52: #{bottleneck_forward.1} parent=5 // pred_fallthru
        _
      %p1856 = scmp.le.s32.totalorder 2, %s15
      // Predicated region
      $region61: #{bottleneck_forward.1} parent=5 // pred_check
        %p1857 = pneg %p1856
      $region62: #{bottleneck_forward.1} parent=5 // pred_check_branch
        %1859 = sbr.rel (%p1857) target = $region64
      $region63: #{bottleneck_forward.1} parent=5 // pred_region
        %s1860 = ssub.s32 %s15, 2
        // Predicated region
        $region65: #{bottleneck_forward.1} parent=63 // pred_check
          %p1861 = pneg %p217
        $region66: #{bottleneck_forward.1} parent=63 // pred_check_branch
          %1863 = sbr.rel (%p1861) target = $region68
        $region67: #{bottleneck_forward.1} parent=63 // pred_region
          %p1864 = scmp.lt.s32.totalorder %s21, 1
          %s1865 = scalar_select %p1864, %s21, 1
          %s1866 = smul.addr %s1865, 8
          %s1867 = smul.addr %s1866, 8
          %s1868 = scalar_lea.vmem %s8, %s1867
        $region68: #{bottleneck_forward.1} parent=63 // pred_fallthru
          _
      $region64: #{bottleneck_forward.1} parent=5 // pred_fallthru
        _
    $region6: #{bottleneck_forward.1} parent=1 // loop_footer
      %s19 = sadd.s32 1, %s15
    $region7: #{bottleneck_forward.1} parent=1 // loop_footer_branch
      %14 = sbr.rel target = $region3
    $region8: #{bottleneck_forward.1} parent=1 // loop_exit
      _
    %1869 = vsyncpa [#allocation4], 1
    %s1870 = scalar_lea.sflag [#allocation4], 1
    %1871 = vsyncpa %s1870, 1

</llo_original>
